<compile_context>
chip_gen: v7x
topology: tpu7x:2x2x1
jax: 0.10.0
libtpu: 0.0.40
codegen_flags: <defaults>
</compile_context>

<pallas_src>
import functools
import math

import jax
import jax.numpy as jnp
from jax import lax
from jax.experimental import pallas as pl
from jax.experimental.pallas import tpu as pltpu


def matcher_kernel(x_ref, wqkv_ref, wout_ref, o_ref, qkv_ref, oheads_ref, *,
                   heads, head_dim, hw_valid, q_tile, use_bf16_softmax):
    # x_ref:      (1, C_in, HWp)      bf16
    # wqkv_ref:   (C_in, 3*heads*D)   bf16 (Q columns pre-scaled by 1/sqrt(D))
    # wout_ref:   (C_out, heads*D)    bf16
    # o_ref:      (1, C_out, q_tile)
    # qkv_ref:    (3*heads*D, HWp)    bf16 VMEM scratch
    # oheads_ref: (heads*D, q_tile)   bf16 VMEM scratch
    hd = heads * head_dim
    hw_pad = x_ref.shape[-1]

    # --- Fused QKV projection: lane-dense (C_in, 3hd) weight, contract dim 0 of both
    # operands (no materialized transpose). Recomputed per query tile: ~2*3hd*C_in*HWp
    # flops, negligible, and keeps both grid axes fully parallel/megacore-safe. ---
    x = x_ref[0]                                                      # (C_in, HWp)
    qkv = lax.dot_general(wqkv_ref[...], x, (((0,), (0,)), ((), ())),
                          preferred_element_type=jnp.float32)         # (3hd, HWp)
    qkv_ref[...] = qkv.astype(jnp.bfloat16)

    qcol = pl.multiple_of(pl.program_id(1) * q_tile, q_tile)

    # Hoisted loop invariants (JAX does not CSE broadcasts inside the loop).
    ones8 = jnp.ones((8, hw_pad), jnp.bfloat16)           # MXU operand for the key-sum
    if hw_valid != hw_pad:
        key_mask = lax.broadcasted_iota(jnp.int32, (hw_pad, q_tile), 0) < hw_valid
    else:
        key_mask = None

    # --- Per-head attention; visible fori_loop bounds vreg live ranges. ---
    def head_body(h, carry):
        q_off = pl.multiple_of(h * head_dim, head_dim)
        k_off = pl.multiple_of(hd + h * head_dim, head_dim)
        v_off = pl.multiple_of(2 * hd + h * head_dim, head_dim)
        q_t = qkv_ref[pl.ds(q_off, head_dim), pl.ds(qcol, q_tile)]    # (D, Tq)  bf16
        k_t = qkv_ref[pl.ds(k_off, head_dim), :]                      # (D, HWp) bf16
        v_t = qkv_ref[pl.ds(v_off, head_dim), :]                      # (D, HWp) bf16

        # s_t[j, i] = <k_j, q_i> (1/sqrt(D) already folded into q weights).
        s_t = lax.dot_general(k_t, q_t, (((0,), (0,)), ((), ())),
                              preferred_element_type=jnp.float32)     # (HWp, Tq)
        if key_mask is not None:
            s_t = jnp.where(key_mask, s_t, jnp.float32(-1e30))
        m = jnp.max(s_t, axis=0, keepdims=True)                       # (1, Tq)
        if use_bf16_softmax:
            p_t = jnp.exp((s_t - m).astype(jnp.bfloat16))             # packed bf16 EUP
        else:
            p_t = jnp.exp(s_t - m).astype(jnp.bfloat16)               # f32 EUP + cast

        # Softmax denominator on the MXU (slack there) instead of a sublane reduction.
        l8 = lax.dot_general(ones8, p_t, (((1,), (0,)), ((), ())),
                             preferred_element_type=jnp.float32)      # (8, Tq)
        # o_t[d, i] = sum_j v[d, j] * p[j, i]   (bf16 MXU, f32 accumulation)
        o_t = lax.dot_general(v_t, p_t, (((1,), (0,)), ((), ())),
                              preferred_element_type=jnp.float32)     # (D, Tq)
        # Normalize the (D, Tq) result, not the (HWp, Tq) matrix; reciprocal on EUP.
        o_t = o_t * pl.reciprocal(l8[0:1, :], approx=True)
        oheads_ref[pl.ds(q_off, head_dim), :] = o_t.astype(jnp.bfloat16)
        return carry

    lax.fori_loop(0, heads, head_body, 0)

    # --- Fused output projection, lane-dense (C_out, Tq) store. ---
    out = lax.dot_general(wout_ref[...], oheads_ref[...],
                          (((1,), (0,)), ((), ())),
                          preferred_element_type=jnp.float32)         # (C_out, Tq)
    o_ref[0] = out.astype(o_ref.dtype)


def _bf16_softmax_ok():
    """bf16 EUP/VPU exists on v6e/v7x; keep f32 exp on v5e and older / unknown."""
    try:
        kind = jax.devices()[0].device_kind.lower()
    except Exception:
        return False
    return any(tag in kind for tag in ("v6", "v7", "6e", "7x"))


def prepare_matcher_weights(w_qkv, w_out, head_dim):
    """One-time weight prep (hoist to init time in real use): fold 1/sqrt(D) into the Q
    rows, transpose to (C_in, 3*heads*D) so the wide dim is lane-dense inside the kernel,
    and cast both weights to bf16 for the native MXU path."""
    hd = w_qkv.shape[0] // 3
    w_qkv = jnp.asarray(w_qkv).at[:hd].multiply(1.0 / math.sqrt(head_dim))
    return w_qkv.T.astype(jnp.bfloat16), jnp.asarray(w_out).astype(jnp.bfloat16)


def matcher_forward(x_nchw, w_qkv, w_out, heads, head_dim, *, q_tile=128):
    """x_nchw: (B, C_in, H, W); w_qkv: (3*heads*D, C_in); w_out: (C_out, heads*D)."""
    b, c_in, h, w = x_nchw.shape
    hw = h * w
    c_out = w_out.shape[0]
    hd = heads * head_dim

    hw_pad = pl.cdiv(hw, q_tile) * q_tile          # lane-align the spatial axis
    n_qt = hw_pad // q_tile

    x_r = x_nchw.reshape(b, c_in, hw)
    if hw_pad != hw:
        x_r = jnp.pad(x_r, ((0, 0), (0, 0), (0, hw_pad - hw)))
    x_bf = x_r.astype(jnp.bfloat16)                # halves the per-step input DMA

    wqkv_t, wout_bf = prepare_matcher_weights(w_qkv, w_out, head_dim)

    kernel = functools.partial(
        matcher_kernel, heads=heads, head_dim=head_dim, hw_valid=hw,
        q_tile=q_tile, use_bf16_softmax=_bf16_softmax_ok())

    n_steps = b * n_qt
    flops_per_step = (2 * (3 * hd) * c_in * hw_pad
                      + heads * (4 * head_dim + 16) * hw_pad * q_tile
                      + 2 * c_out * hd * q_tile)
    cost = pl.CostEstimate(
        flops=n_steps * flops_per_step,
        transcendentals=n_steps * heads * hw_pad * q_tile,
        bytes_accessed=(b * c_in * hw_pad * 2 + (c_in * 3 * hd + c_out * hd) * 2
                        + b * c_out * hw_pad * 4))

    out = pl.pallas_call(
        kernel,
        out_shape=jax.ShapeDtypeStruct((b, c_out, hw_pad), x_nchw.dtype),
        grid=(b, n_qt),
        in_specs=[
            pl.BlockSpec((1, c_in, hw_pad), lambda i, t: (i, 0, 0)),
            pl.BlockSpec((c_in, 3 * hd), lambda i, t: (0, 0)),
            pl.BlockSpec((c_out, hd), lambda i, t: (0, 0)),
        ],
        out_specs=pl.BlockSpec((1, c_out, q_tile), lambda i, t: (i, 0, t)),
        scratch_shapes=[
            pltpu.VMEM((3 * hd, hw_pad), jnp.bfloat16),   # fused q|k|v result
            pltpu.VMEM((hd, q_tile), jnp.bfloat16),       # per-tile concatenated head outs
        ],
        compiler_params=pltpu.CompilerParams(
            dimension_semantics=("parallel", "parallel"),
            vmem_limit_bytes=48 * 1024 * 1024,            # conservative for v7x's 64 MiB
        ),
        cost_estimate=cost,
    )(x_bf, wqkv_t, wout_bf)

    return out[:, :, :hw].reshape(b, c_out, h, w)


def matcher_ref(x, w_qkv, w_out, heads, head_dim):
    """Pure-JAX reference mirroring the PyTorch forward exactly."""
    b, c, h, w = x.shape
    hw = h * w
    qkv = jnp.einsum("oc,bchw->bohw", w_qkv, x).reshape(b, 3, heads, head_dim, hw)
    q, k, v = qkv[:, 0], qkv[:, 1], qkv[:, 2]
    q = jnp.transpose(q, (0, 1, 3, 2))                                # (b, heads, hw, D)
    s = jnp.einsum("bhid,bhdj->bhij", q, k) / math.sqrt(head_dim)
    attn = jax.nn.softmax(s, axis=-1)
    out = jnp.einsum("bhij,bhjd->bhid", attn, jnp.transpose(v, (0, 1, 3, 2)))
    out = jnp.transpose(out, (0, 1, 3, 2)).reshape(b, heads * head_dim, h, w)
    return jnp.einsum("oc,bchw->bohw", w_out, out)


if __name__ == "__main__":
    heads, head_dim = 4, 64
    key = jax.random.PRNGKey(0)

    # Case 1: lane-aligned spatial (16x16).  Case 2: padded + key-masked path (12x12).
    for (b, c_in, c_out, h, w) in [(2, 4, 8, 16, 16), (1, 4, 8, 12, 12)]:
        k1, k2, k3, key = jax.random.split(key, 4)
        x = jax.random.normal(k1, (b, c_in, h, w), jnp.float32)
        w_qkv = jax.random.normal(k2, (3 * heads * head_dim, c_in),
                                  jnp.float32) / math.sqrt(c_in)
        w_out = jax.random.normal(k3, (c_out, heads * head_dim),
                                  jnp.float32) / math.sqrt(heads * head_dim)

        y = jax.block_until_ready(matcher_forward(x, w_qkv, w_out, heads, head_dim))
        assert y.shape == (b, c_out, h, w)

        y_ref = matcher_ref(x, w_qkv, w_out, heads, head_dim)
        max_err = float(jnp.max(jnp.abs(y - y_ref)))
        # bf16 inputs/weights/activations + approx reciprocal -> loose tolerance.
        assert jnp.allclose(y, y_ref, atol=1e-1, rtol=1e-1), (b, h, w, max_err)

    print("KERNEL_OK")
</pallas_src>

<mosaic_0001>
module attributes {stable_mosaic.version = 11 : i64} {
  func.func @matcher_kernel(%arg0: i32, %arg1: i32, %arg2: memref<1x4x256xbf16, #tpu.memory_space<vmem>>, %arg3: memref<4x768xbf16, #tpu.memory_space<vmem>>, %arg4: memref<8x256xbf16, #tpu.memory_space<vmem>>, %arg5: memref<1x8x128xf32, #tpu.memory_space<vmem>>, %arg6: memref<768x256xbf16, #tpu.memory_space<vmem>>, %arg7: memref<256x128xbf16, #tpu.memory_space<vmem>>) attributes {dimension_semantics = [#tpu.dimension_semantics<parallel>, #tpu.dimension_semantics<parallel>], iteration_bounds = array<i64: 2, 2>, scalar_prefetch = 0 : i64, scratch_operands = 2 : i64, tpu.core_type = #tpu.core_type<tc>, window_params = [{transform_indices = @transform_0, window_bounds = array<i64: 1, 4, 256>}, {pipeline_mode = #tpu.pipeline_mode<synchronous>, transform_indices = @transform_1, window_bounds = array<i64: 4, 768>}, {pipeline_mode = #tpu.pipeline_mode<synchronous>, transform_indices = @transform_2, window_bounds = array<i64: 8, 256>}, {transform_indices = @transform_3, window_bounds = array<i64: 1, 8, 128>}]} {
    %c0 = arith.constant 0 : index
    %c0_0 = arith.constant 0 : index
    %c0_1 = arith.constant 0 : index
    %0 = vector.load %arg2[%c0, %c0_0, %c0_1] : memref<1x4x256xbf16, #tpu.memory_space<vmem>>, vector<1x4x256xbf16>
    %1 = vector.shape_cast %0 : vector<1x4x256xbf16> to vector<4x256xbf16>
    %c0_2 = arith.constant 0 : index
    %c0_3 = arith.constant 0 : index
    %2 = vector.load %arg3[%c0_2, %c0_3] : memref<4x768xbf16, #tpu.memory_space<vmem>>, vector<4x768xbf16>
    %cst = arith.constant dense<0.000000e+00> : vector<768x256xf32>
    %3 = tpu.matmul %2, %1, %cst {dimension_numbers = #tpu.dot_dimension_numbers<[0], [0], [1], [1], [0, 1, 1, 1], [], []>} : vector<4x768xbf16>, vector<4x256xbf16>, vector<768x256xf32> -> vector<768x256xf32>
    %4 = arith.truncf %3 : vector<768x256xf32> to vector<768x256xbf16>
    %c0_4 = arith.constant 0 : index
    %c0_5 = arith.constant 0 : index
    %5 = vector.load %arg6[%c0_4, %c0_5] : memref<768x256xbf16, #tpu.memory_space<vmem>>, vector<768x256xbf16>
    tpu.vector_store %arg6[%c0_4, %c0_5], %4 {strides = array<i32>} : memref<768x256xbf16, #tpu.memory_space<vmem>>, vector<768x256xbf16>,
    %c128_i32 = arith.constant 128 : i32
    %6 = arith.muli %arg1, %c128_i32 : i32
    %7 = tpu.assume_multiple %6, 128 : i32
    %cst_6 = arith.constant 1.000000e+00 : bf16
    %8 = vector.broadcast %cst_6 : bf16 to vector<8x256xbf16>
    %c0_i32 = arith.constant 0 : i32
    %c4_i32 = arith.constant 4 : i32
    %9 = arith.addi %c0_i32, %c4_i32 : i32
    %c1_i32 = arith.constant 1 : i32
    scf.for %arg8 = %c0_i32 to %9 step %c1_i32  : i32 {
      %c64_i32 = arith.constant 64 : i32
      %16 = arith.muli %arg8, %c64_i32 : i32
      %17 = tpu.assume_multiple %16, 64 : i32
      %c64_i32_16 = arith.constant 64 : i32
      %18 = arith.muli %arg8, %c64_i32_16 : i32
      %c256_i32 = arith.constant 256 : i32
      %19 = arith.addi %c256_i32, %18 : i32
      %20 = tpu.assume_multiple %19, 64 : i32
      %c64_i32_17 = arith.constant 64 : i32
      %21 = arith.muli %arg8, %c64_i32_17 : i32
      %c512_i32 = arith.constant 512 : i32
      %22 = arith.addi %c512_i32, %21 : i32
      %23 = tpu.assume_multiple %22, 64 : i32
      %24 = arith.index_cast %17 : i32 to index
      %25 = arith.index_cast %7 : i32 to index
      %26 = vector.load %arg6[%24, %25] : memref<768x256xbf16, #tpu.memory_space<vmem>>, vector<64x128xbf16>
      %27 = arith.index_cast %20 : i32 to index
      %c0_18 = arith.constant 0 : index
      %28 = vector.load %arg6[%27, %c0_18] : memref<768x256xbf16, #tpu.memory_space<vmem>>, vector<64x256xbf16>
      %29 = arith.index_cast %23 : i32 to index
      %c0_19 = arith.constant 0 : index
      %30 = vector.load %arg6[%29, %c0_19] : memref<768x256xbf16, #tpu.memory_space<vmem>>, vector<64x256xbf16>
      %cst_20 = arith.constant dense<0.000000e+00> : vector<256x128xf32>
      %31 = tpu.matmul %28, %26, %cst_20 {dimension_numbers = #tpu.dot_dimension_numbers<[0], [0], [1], [1], [0, 1, 1, 1], [], []>} : vector<64x256xbf16>, vector<64x128xbf16>, vector<256x128xf32> -> vector<256x128xf32>
      %cst_21 = arith.constant dense<0xFF800000> : vector<128xf32>
      %32 = vector.multi_reduction <maximumf>, %31, %cst_21 [0] : vector<256x128xf32> to vector<128xf32>
      %33 = vector.shape_cast %32 : vector<128xf32> to vector<1x128xf32>
      %34 = vector.broadcast %33 : vector<1x128xf32> to vector<256x128xf32>
      %35 = arith.subf %31, %34 : vector<256x128xf32>
      %36 = math.exp %35 : vector<256x128xf32>
      %37 = arith.truncf %36 : vector<256x128xf32> to vector<256x128xbf16>
      %cst_22 = arith.constant dense<0.000000e+00> : vector<8x128xf32>
      %38 = tpu.matmul %8, %37, %cst_22 {dimension_numbers = #tpu.dot_dimension_numbers<[1], [0], [0], [1], [0, 0, 1, 1], [], []>} : vector<8x256xbf16>, vector<256x128xbf16>, vector<8x128xf32> -> vector<8x128xf32>
      %cst_23 = arith.constant dense<0.000000e+00> : vector<64x128xf32>
      %39 = tpu.matmul %30, %37, %cst_23 {dimension_numbers = #tpu.dot_dimension_numbers<[1], [0], [0], [1], [0, 0, 1, 1], [], []>} : vector<64x256xbf16>, vector<256x128xbf16>, vector<64x128xf32> -> vector<64x128xf32>
      %40 = vector.extract_strided_slice %38 {offsets = [0, 0], sizes = [1, 128], strides = [1, 1]} : vector<8x128xf32> to vector<1x128xf32>
      %41 = tpu.reciprocal %40 {approx = true} : vector<1x128xf32> -> vector<1x128xf32>
      %42 = vector.broadcast %41 : vector<1x128xf32> to vector<64x128xf32>
      %43 = arith.mulf %39, %42 : vector<64x128xf32>
      %44 = arith.truncf %43 : vector<64x128xf32> to vector<64x128xbf16>
      %45 = arith.index_cast %17 : i32 to index
      %c0_24 = arith.constant 0 : index
      %46 = vector.load %arg7[%45, %c0_24] : memref<256x128xbf16, #tpu.memory_space<vmem>>, vector<64x128xbf16>
      tpu.vector_store %arg7[%45, %c0_24], %44 {strides = array<i32>} : memref<256x128xbf16, #tpu.memory_space<vmem>>, vector<64x128xbf16>,
    }
    %c4_i32_7 = arith.constant 4 : i32
    %c0_8 = arith.constant 0 : index
    %c0_9 = arith.constant 0 : index
    %10 = vector.load %arg4[%c0_8, %c0_9] : memref<8x256xbf16, #tpu.memory_space<vmem>>, vector<8x256xbf16>
    %c0_10 = arith.constant 0 : index
    %c0_11 = arith.constant 0 : index
    %11 = vector.load %arg7[%c0_10, %c0_11] : memref<256x128xbf16, #tpu.memory_space<vmem>>, vector<256x128xbf16>
    %cst_12 = arith.constant dense<0.000000e+00> : vector<8x128xf32>
    %12 = tpu.matmul %10, %11, %cst_12 {dimension_numbers = #tpu.dot_dimension_numbers<[1], [0], [0], [1], [0, 0, 1, 1], [], []>} : vector<8x256xbf16>, vector<256x128xbf16>, vector<8x128xf32> -> vector<8x128xf32>
    %c0_13 = arith.constant 0 : index
    %c0_14 = arith.constant 0 : index
    %c0_15 = arith.constant 0 : index
    %13 = vector.load %arg5[%c0_13, %c0_14, %c0_15] : memref<1x8x128xf32, #tpu.memory_space<vmem>>, vector<1x8x128xf32>
    %14 = vector.shape_cast %13 : vector<1x8x128xf32> to vector<8x128xf32>
    %15 = vector.shape_cast %12 : vector<8x128xf32> to vector<1x8x128xf32>
    tpu.vector_store %arg5[%c0_13, %c0_14, %c0_15], %15 {strides = array<i32>} : memref<1x8x128xf32, #tpu.memory_space<vmem>>, vector<1x8x128xf32>,
    return
  }
  func.func @transform_0(%arg0: i32, %arg1: i32) -> (i32, i32, i32) {
    %c0_i32 = arith.constant 0 : i32
    %c0_i32_0 = arith.constant 0 : i32
    %c0_i32_1 = arith.constant 0 : i32
    return %arg0, %c0_i32, %c0_i32_0 : i32, i32, i32
  }
  func.func @transform_1(%arg0: i32, %arg1: i32) -> (i32, i32) {
    %c0_i32 = arith.constant 0 : i32
    %c0_i32_0 = arith.constant 0 : i32
    %c0_i32_1 = arith.constant 0 : i32
    return %c0_i32, %c0_i32_0 : i32, i32
  }
  func.func @transform_2(%arg0: i32, %arg1: i32) -> (i32, i32) {
    %c0_i32 = arith.constant 0 : i32
    %c0_i32_0 = arith.constant 0 : i32
    %c0_i32_1 = arith.constant 0 : i32
    return %c0_i32, %c0_i32_0 : i32, i32
  }
  func.func @transform_3(%arg0: i32, %arg1: i32) -> (i32, i32, i32) {
    %c0_i32 = arith.constant 0 : i32
    %c0_i32_0 = arith.constant 0 : i32
    return %arg0, %c0_i32, %arg1 : i32, i32, i32
  }
}

</mosaic_0001>

<llo_original>
// kernel: tpu_custom_call.1
$region0: #{tpu_custom_call.1}
  #allocation0 [shape = 'u32[]', space=smem, size = 0x4, offset = 0x4, fixed_abs, tag = 'smem constant byte address 0x4 - core index']
  #allocation1 [shape = 'u32[144,128]{1,0:T(1,128)}', space=vmem, size = 0x12000, scoped, tag = 'internal scratch']
  #allocation2 [shape = 'bf16[768,256]{1,0:T(16,128)(2,1)}', space=vmem, size = 0x60000, scoped, tag = 'scratch operand']
  #allocation3 [shape = 'bf16[256,128]{1,0:T(16,128)(2,1)}', space=vmem, size = 0x10000, scoped, tag = 'scratch operand']
  %s0 = inlined_call_operand.hbm [shape: bf16[2,4,256], index: 0, kind: input, shape index: {}]
  %s1 = inlined_call_operand.hbm [shape: bf16[4,768], index: 1, kind: input, shape index: {}]
  %s2 = inlined_call_operand.hbm [shape: bf16[8,256], index: 2, kind: input, shape index: {}]
  %s3 = inlined_call_operand.hbm [shape: f32[2,8,256], index: 3, kind: output, shape index: {}]
  %s4 = sld [smem:[#allocation0]]
  $region64: #{tpu_custom_call.1} parent=0
    _
  %s6 = ssub.s32 1, %s4
  %s7 = scalar_select 0, %s6, %s4
  $region1: #{tpu_custom_call.1} parent=0
    #allocation4 [shape = 'u8[4096]{0}', space=vmem, size = 0x1000, scoped, tag = 'input window, operand 0']
    #allocation5 [shape = 's32[2]{0}', space=sflag, size = 0x8, scoped, tag = 'scoped memory for tpu_custom_call.1']
    #allocation6 [shape = 's32[2]{0}', space=sflag, size = 0x8, scoped, tag = 'scoped memory for tpu_custom_call.1']
    #allocation7 [shape = 'u8[6144]{0}', space=vmem, size = 0x1800, scoped, tag = 'input window, operand 1, single buffered']
    #allocation8 [shape = 's32[1]{0}', space=sflag, size = 0x4, scoped, tag = 'scoped memory for tpu_custom_call.1']
    #allocation9 [shape = 'u8[4096]{0}', space=vmem, size = 0x1000, scoped, tag = 'input window, operand 2, single buffered']
    #allocation10 [shape = 'u8[8192]{0}', space=vmem, size = 0x2000, scoped, tag = 'output window, operand 0']
    %8 = vsyncpa [#allocation5], 0
    %s9 = scalar_lea.sflag [#allocation5], 1
    %10 = vsyncpa %s9, 0
    %11 = vsyncpa [#allocation8], 0
    %12 = vsyncpa [#allocation6], 0
    %s13 = scalar_lea.sflag [#allocation6], 1
    %14 = vsyncpa %s13, 0
    loop: start=0, step=1, limit=6
    $region2: #{tpu_custom_call.1} parent=1 // loop_pre_header
      _
    $region3: #{tpu_custom_call.1} parent=1 // loop_header
      %s16 = sphi 0, %s20
      %p17 = scmp.ge.s32.totalorder %s16, 6
      %s23 = sphi 0, %s35
      %s24 = sphi 0, %s31
      %s25 = sphi 0, %s23
      %s26 = sphi 0, %s24
      %s27 = sphi 0, %s25
      %s28 = sphi 0, %s26
      %s38 = sphi 0, %s40
      %s41 = sphi 0, %s38
      %s42 = sphi 0, %s41
      %s58 = sphi 0, %s42
      %s62 = sphi 0, %s62
      %s64 = sphi 0, %s62
      %s65 = sphi 0, %s64
      %s79 = sphi 0, %s65
      %s83 = sphi 0, %s83
      %s85 = sphi 0, %s83
      %s86 = sphi 0, %s85
      %s100 = sphi 0, %s86
      %s108 = sphi 0, %s110
      %s111 = sphi 0, %s108
      %s112 = sphi 0, %s111
      %s128 = sphi 0, %s112
    $region4: #{tpu_custom_call.1} parent=1 // loop_header_branch
      %19 = sbr.rel (%p17) target = $region8
    $region5: #{tpu_custom_call.1} parent=1 // loop_body
      %s21 = ssub.s32 %s16, 1
      %s22 = ssub.s32 %s16, 2
      %s29 = sadd.s32 1, %s24
      %p30 = scmp.ge.s32.totalorder %s29, 2
      %s31 = scalar_select %p30, 0, %s29
      %s32 = sadd.s32 1, %s23
      %s33 = scalar_select %p30, %s32, %s23
      %p34 = scmp.ge.s32.totalorder %s33, 2
      %s35 = scalar_select %p34, 0, %s33
      %s36 = ssub.s32 %s23, %s35
      %p37 = scmp.eq.s32.totalorder %s36, 0
      %s39 = sadd.s32 %s38, 1
      %s40 = scalar_select %p37, %s38, %s39
      %p43 = pneg %p37
      %p44 = scmp.eq.s32.totalorder %s16, 3
      %p45 = por %p43, %p44
      %p46 = scmp.ne.s32.totalorder %s38, %s41
      %p47 = scmp.eq.s32.totalorder %s16, 0
      %p48 = por %p46, %p47
      %p49 = scmp.ne.s32.totalorder %s38, %s41
      %p50 = scmp.eq.s32.totalorder %s21, 3
      %p51 = por %p49, %p50
      %p52 = scmp.ne.s32.totalorder %s41, %s42
      %p53 = scmp.eq.s32.totalorder %s21, 0
      %p54 = por %p52, %p53
      %p55 = scmp.ne.s32.totalorder %s41, %s42
      %p56 = scmp.eq.s32.totalorder %s22, 3
      %p57 = por %p55, %p56
      %p59 = scmp.ne.s32.totalorder %s42, %s58
      %p60 = scmp.eq.s32.totalorder %s22, 0
      %p61 = por %p59, %p60
      %s63 = sadd.s32 %s62, 1
      %p66 = scmp.eq.s32.totalorder %s16, 3
      %p67 = scmp.ne.s32.totalorder %s62, %s64
      %p68 = scmp.eq.s32.totalorder %s16, 0
      %p69 = por %p67, %p68
      %p70 = scmp.ne.s32.totalorder %s62, %s64
      %p71 = scmp.eq.s32.totalorder %s21, 3
      %p72 = por %p70, %p71
      %p73 = scmp.ne.s32.totalorder %s64, %s65
      %p74 = scmp.eq.s32.totalorder %s21, 0
      %p75 = por %p73, %p74
      %p76 = scmp.ne.s32.totalorder %s64, %s65
      %p77 = scmp.eq.s32.totalorder %s22, 3
      %p78 = por %p76, %p77
      %p80 = scmp.ne.s32.totalorder %s65, %s79
      %p81 = scmp.eq.s32.totalorder %s22, 0
      %p82 = por %p80, %p81
      %s84 = sadd.s32 %s83, 1
      %p87 = scmp.eq.s32.totalorder %s16, 3
      %p88 = scmp.ne.s32.totalorder %s83, %s85
      %p89 = scmp.eq.s32.totalorder %s16, 0
      %p90 = por %p88, %p89
      %p91 = scmp.ne.s32.totalorder %s83, %s85
      %p92 = scmp.eq.s32.totalorder %s21, 3
      %p93 = por %p91, %p92
      %p94 = scmp.ne.s32.totalorder %s85, %s86
      %p95 = scmp.eq.s32.totalorder %s21, 0
      %p96 = por %p94, %p95
      %p97 = scmp.ne.s32.totalorder %s85, %s86
      %p98 = scmp.eq.s32.totalorder %s22, 3
      %p99 = por %p97, %p98
      %p101 = scmp.ne.s32.totalorder %s86, %s100
      %p102 = scmp.eq.s32.totalorder %s22, 0
      %p103 = por %p101, %p102
      %s104 = ssub.s32 %s23, %s35
      %s105 = ssub.s32 %s24, %s31
      %s106 = sor.u32 %s104, %s105
      %p107 = scmp.eq.s32.totalorder %s106, 0
      %s109 = sadd.s32 %s108, 1
      %s110 = scalar_select %p107, %s108, %s109
      %p113 = pneg %p107
      %p114 = scmp.eq.s32.totalorder %s16, 3
      %p115 = por %p113, %p114
      %p116 = scmp.ne.s32.totalorder %s108, %s111
      %p117 = scmp.eq.s32.totalorder %s16, 0
      %p118 = por %p116, %p117
      %p119 = scmp.ne.s32.totalorder %s108, %s111
      %p120 = scmp.eq.s32.totalorder %s21, 3
      %p121 = por %p119, %p120
      %p122 = scmp.ne.s32.totalorder %s111, %s112
      %p123 = scmp.eq.s32.totalorder %s21, 0
      %p124 = por %p122, %p123
      %p125 = scmp.ne.s32.totalorder %s111, %s112
      %p126 = scmp.eq.s32.totalorder %s22, 3
      %p127 = por %p125, %p126
      %p129 = scmp.ne.s32.totalorder %s112, %s128
      %p130 = scmp.eq.s32.totalorder %s22, 0
      %p131 = por %p129, %p130
      %p132 = scmp.le.s32.totalorder 1, %s16
      %p133 = scmp.lt.s32.totalorder %s16, 5
      %p134 = pnand %p132, %p133
      %p135 = pneg %p134
      // Predicated region
      $region9: #{tpu_custom_call.1} parent=5 // pred_check
        _
      $region10: #{tpu_custom_call.1} parent=5 // pred_check_branch
        %137 = sbr.rel (%p134) target = $region12
      $region11: #{tpu_custom_call.1} parent=5 // pred_region
        %s138 = ssub.s32 %s16, 1
        // Predicated region
        $region13: #{tpu_custom_call.1} parent=11 // pred_check
          %p139 = pneg %p75
        $region14: #{tpu_custom_call.1} parent=11 // pred_check_branch
          %141 = sbr.rel (%p139) target = $region16
        $region15: #{tpu_custom_call.1} parent=11 // pred_region
          %s143 = ssub.s32 192, 192
          %144 = vsyncadd [#allocation8], %s143
          %s146 = sshll.u32 [#allocation7], 4
          %s147 = int_to_ptr.vmem [resolvable:$true] %s146
          %149 = dma.hbm_to_vmem [thread:$0]  %s1, 192, %s147, [#allocation8]
        $region16: #{tpu_custom_call.1} parent=11 // pred_fallthru
          _
        // Predicated region
        $region17: #{tpu_custom_call.1} parent=11 // pred_check
          %p150 = pneg %p96
        $region18: #{tpu_custom_call.1} parent=11 // pred_check_branch
          %152 = sbr.rel (%p150) target = $region20
        $region19: #{tpu_custom_call.1} parent=11 // pred_region
          %s154 = ssub.s32 128, 128
          %155 = vsyncadd [#allocation8], %s154
          %s157 = sshll.u32 [#allocation9], 4
          %s158 = int_to_ptr.vmem [resolvable:$true] %s157
          %160 = dma.hbm_to_vmem [thread:$0]  %s2, 128, %s158, [#allocation8]
        $region20: #{tpu_custom_call.1} parent=11 // pred_fallthru
          _
      $region12: #{tpu_custom_call.1} parent=5 // pred_fallthru
        _
      %p161 = scmp.lt.s32.totalorder %s16, 4
      // Predicated region
      $region21: #{tpu_custom_call.1} parent=5 // pred_check
        %p162 = pneg %p161
      $region22: #{tpu_custom_call.1} parent=5 // pred_check_branch
        %164 = sbr.rel (%p162) target = $region24
      $region23: #{tpu_custom_call.1} parent=5 // pred_region
        // Predicated region
        $region25: #{tpu_custom_call.1} parent=23 // pred_check
          %p165 = pneg %p48
        $region26: #{tpu_custom_call.1} parent=23 // pred_check_branch
          %167 = sbr.rel (%p165) target = $region28
        $region27: #{tpu_custom_call.1} parent=23 // pred_region
          %s168 = sand.u32 %s38, 1
          %s169 = scalar_lea.sflag [#allocation5], %s168
          %s170 = sand.u32 %s38, 1
          %s171 = smul.addr %s170, 4
          %s172 = scalar_lea.vmem [#allocation4], %s171
          %s174 = ssub.s32 64, 64
          %175 = vsyncadd %s169, %s174
          %s176 = smul.addr %s23, 2
          %s177 = smul.addr %s176, 32
          %s178 = scalar_lea.hbm %s0, %s177
          %s180 = sshll.u32 %s172, 4
          %s181 = int_to_ptr.vmem [resolvable:$true] %s180
          %183 = dma.hbm_to_vmem [thread:$0]  %s178, 64, %s181, %s169
        $region28: #{tpu_custom_call.1} parent=23 // pred_fallthru
          _
      $region24: #{tpu_custom_call.1} parent=5 // pred_fallthru
        _
      %p184 = scmp.le.s32.totalorder 1, %s16
      %p185 = scmp.lt.s32.totalorder %s16, 5
      %p186 = pnand %p184, %p185
      %p187 = pneg %p186
      // Predicated region
      $region29: #{tpu_custom_call.1} parent=5 // pred_check
        _
      $region30: #{tpu_custom_call.1} parent=5 // pred_check_branch
        %189 = sbr.rel (%p186) target = $region32
      $region31: #{tpu_custom_call.1} parent=5 // pred_region
        %s190 = ssub.s32 %s16, 1
        %s191 = sand.u32 %s41, 1
        %s192 = scalar_lea.sflag [#allocation5], %s191
        %s193 = sand.u32 %s41, 1
        %s194 = smul.addr %s193, 4
        %s195 = scalar_lea.vmem [#allocation4], %s194
        // Predicated region
        $region33: #{tpu_custom_call.1} parent=31 // pred_check
          %p196 = pneg %p54
        $region34: #{tpu_custom_call.1} parent=31 // pred_check_branch
          %198 = sbr.rel (%p196) target = $region36
        $region35: #{tpu_custom_call.1} parent=31 // pred_region
          %199 = dma.done %s192, 64
        $region36: #{tpu_custom_call.1} parent=31 // pred_fallthru
          _
        // Predicated region
        $region37: #{tpu_custom_call.1} parent=31 // pred_check
          %p200 = pneg %p75
        $region38: #{tpu_custom_call.1} parent=31 // pred_check_branch
          %202 = sbr.rel (%p200) target = $region40
        $region39: #{tpu_custom_call.1} parent=31 // pred_region
          %203 = dma.done [#allocation8], 192
        $region40: #{tpu_custom_call.1} parent=31 // pred_fallthru
          _
        // Predicated region
        $region41: #{tpu_custom_call.1} parent=31 // pred_check
          %p204 = pneg %p96
        $region42: #{tpu_custom_call.1} parent=31 // pred_check_branch
          %206 = sbr.rel (%p204) target = $region44
        $region43: #{tpu_custom_call.1} parent=31 // pred_region
          %207 = dma.done [#allocation8], 128
        $region44: #{tpu_custom_call.1} parent=31 // pred_fallthru
          _
        %s208 = sand.u32 %s41, 1
        %s209 = scalar_lea.sflag [#allocation5], %s208
        %s210 = sand.u32 %s41, 1
        %s211 = smul.addr %s210, 4
        %s212 = scalar_lea.vmem [#allocation4], %s211
        %p213 = pneg %p54
        %p214 = pneg %p51
        %p215 = pneg %p75
        %p216 = pneg %p72
        %p217 = pneg %p96
        %p218 = pneg %p93
        %p219 = pneg %p124
        %p220 = pneg %p121
        %s221 = sand.u32 %s111, 1
        %s222 = scalar_lea.sflag [#allocation6], %s221
        %s223 = sand.u32 %s111, 1
        %s224 = smul.addr %s223, 8
        %s225 = scalar_lea.vmem [#allocation10], %s224
        %v228 = vld [vmem:[%s195] sm:$0xf]
        %v229 = vld [vmem:[#allocation7] sm:$0xff]
        %v230 = vld [vmem:[#allocation7 + $0x8] sm:$0xf]
        %v233 = vcombine.high %v229, %v229
        %v235 = vunpack.c.l.s4 1983009808
        %v236 = vunpack.c.0.s8 %v235
        %v237 = vlaneseq
        %v238 = vshrl.u32 %v237, 7
        %v239 = vsub.s32 %v236, %v238
        %v240 = vrot.slane %v229, %v239
        %v242 = vunpack.c.l.s4 1983009808
        %v243 = vunpack.c.0.s8 %v242
        %v244 = vlaneseq
        %v245 = vshrl.u32 %v244, 7
        %v246 = vsub.s32 %v243, %v245
        %v247 = vrot.slane %v233, %v246
        %v248 = vcombine.high %v240, %v240
        %v249 = vcombine.high %v247, %v247
        %v251 = vunpack.c.l.s4 1983009808
        %v252 = vunpack.c.0.s8 %v251
        %v253 = vlaneseq
        %v254 = vshrl.u32 %v253, 7
        %v255 = vsub.s32 %v252, %v254
        %v256 = vrot.slane %v230, %v255
        %v257 = vcombine.high %v256, %v256
        %264 = vxpose.xlu0.c.b16.start [1/8] %v240, 128
        %265 = vxpose.xlu0.c.b16.cont [2/8] 0, 128
        %266 = vxpose.xlu0.c.b16.cont [3/8] 0, 128
        %267 = vxpose.xlu0.c.b16.cont [4/8] 0, 128
        %268 = vxpose.xlu0.c.b16.cont [5/8] 0, 128
        %269 = vxpose.xlu0.c.b16.cont [6/8] 0, 128
        %270 = vxpose.xlu0.c.b16.cont [7/8] 0, 128
        %271 = vxpose.xlu0.c.b16.end [8/8] 0, 128
        %v272 = vpop.trf.xlu0
        %v273 = vpop.trf.xlu0
        %v274 = vpop.trf.xlu0
        %v275 = vpop.trf.xlu0
        %v276 = vpop.trf.xlu0
        %v277 = vpop.trf.xlu0
        %v278 = vpop.trf.xlu0
        %v279 = vpop.trf.xlu0
        %280 = vxpose.xlu0.c.b16.start [1/8] %v248, 128
        %281 = vxpose.xlu0.c.b16.cont [2/8] 0, 128
        %282 = vxpose.xlu0.c.b16.cont [3/8] 0, 128
        %283 = vxpose.xlu0.c.b16.cont [4/8] 0, 128
        %284 = vxpose.xlu0.c.b16.cont [5/8] 0, 128
        %285 = vxpose.xlu0.c.b16.cont [6/8] 0, 128
        %286 = vxpose.xlu0.c.b16.cont [7/8] 0, 128
        %287 = vxpose.xlu0.c.b16.end [8/8] 0, 128
        %v288 = vpop.trf.xlu0
        %v289 = vpop.trf.xlu0
        %v290 = vpop.trf.xlu0
        %v291 = vpop.trf.xlu0
        %v292 = vpop.trf.xlu0
        %v293 = vpop.trf.xlu0
        %v294 = vpop.trf.xlu0
        %v295 = vpop.trf.xlu0
        %296 = vxpose.xlu0.c.b16.start [1/8] %v247, 128
        %297 = vxpose.xlu0.c.b16.cont [2/8] 0, 128
        %298 = vxpose.xlu0.c.b16.cont [3/8] 0, 128
        %299 = vxpose.xlu0.c.b16.cont [4/8] 0, 128
        %300 = vxpose.xlu0.c.b16.cont [5/8] 0, 128
        %301 = vxpose.xlu0.c.b16.cont [6/8] 0, 128
        %302 = vxpose.xlu0.c.b16.cont [7/8] 0, 128
        %303 = vxpose.xlu0.c.b16.end [8/8] 0, 128
        %v304 = vpop.trf.xlu0
        %v305 = vpop.trf.xlu0
        %v306 = vpop.trf.xlu0
        %v307 = vpop.trf.xlu0
        %v308 = vpop.trf.xlu0
        %v309 = vpop.trf.xlu0
        %v310 = vpop.trf.xlu0
        %v311 = vpop.trf.xlu0
        %312 = vxpose.xlu0.c.b16.start [1/8] %v249, 128
        %313 = vxpose.xlu0.c.b16.cont [2/8] 0, 128
        %314 = vxpose.xlu0.c.b16.cont [3/8] 0, 128
        %315 = vxpose.xlu0.c.b16.cont [4/8] 0, 128
        %316 = vxpose.xlu0.c.b16.cont [5/8] 0, 128
        %317 = vxpose.xlu0.c.b16.cont [6/8] 0, 128
        %318 = vxpose.xlu0.c.b16.cont [7/8] 0, 128
        %319 = vxpose.xlu0.c.b16.end [8/8] 0, 128
        %v320 = vpop.trf.xlu0
        %v321 = vpop.trf.xlu0
        %v322 = vpop.trf.xlu0
        %v323 = vpop.trf.xlu0
        %v324 = vpop.trf.xlu0
        %v325 = vpop.trf.xlu0
        %v326 = vpop.trf.xlu0
        %v327 = vpop.trf.xlu0
        %328 = vxpose.xlu0.c.b16.start [1/8] %v256, 128
        %329 = vxpose.xlu0.c.b16.cont [2/8] 0, 128
        %330 = vxpose.xlu0.c.b16.cont [3/8] 0, 128
        %331 = vxpose.xlu0.c.b16.cont [4/8] 0, 128
        %332 = vxpose.xlu0.c.b16.cont [5/8] 0, 128
        %333 = vxpose.xlu0.c.b16.cont [6/8] 0, 128
        %334 = vxpose.xlu0.c.b16.cont [7/8] 0, 128
        %335 = vxpose.xlu0.c.b16.end [8/8] 0, 128
        %v336 = vpop.trf.xlu0
        %v337 = vpop.trf.xlu0
        %v338 = vpop.trf.xlu0
        %v339 = vpop.trf.xlu0
        %v340 = vpop.trf.xlu0
        %v341 = vpop.trf.xlu0
        %v342 = vpop.trf.xlu0
        %v343 = vpop.trf.xlu0
        %344 = vxpose.xlu0.c.b16.start [1/8] %v257, 128
        %345 = vxpose.xlu0.c.b16.cont [2/8] 0, 128
        %346 = vxpose.xlu0.c.b16.cont [3/8] 0, 128
        %347 = vxpose.xlu0.c.b16.cont [4/8] 0, 128
        %348 = vxpose.xlu0.c.b16.cont [5/8] 0, 128
        %349 = vxpose.xlu0.c.b16.cont [6/8] 0, 128
        %350 = vxpose.xlu0.c.b16.cont [7/8] 0, 128
        %351 = vxpose.xlu0.c.b16.end [8/8] 0, 128
        %v352 = vpop.trf.xlu0
        %v353 = vpop.trf.xlu0
        %v354 = vpop.trf.xlu0
        %v355 = vpop.trf.xlu0
        %v356 = vpop.trf.xlu0
        %v357 = vpop.trf.xlu0
        %v358 = vpop.trf.xlu0
        %v359 = vpop.trf.xlu0
        %v362 = vunpack.c.l.s4 1983009808
        %v363 = vunpack.c.0.s8 %v362
        %v364 = vlaneseq
        %v365 = vshrl.u32 %v364, 7
        %v366 = vsub.s32 %v363, %v365
        %v367 = vrot.slane %v228, %v366
        %v368 = vcombine.high %v367, %v367
        %vm369 = vcmask 31744
        %v371 = vsel %vm369, %v272, 0
        %v374 = vsel %vm369, %v273, 0
        %v377 = vsel %vm369, %v274, 0
        %v380 = vsel %vm369, %v275, 0
        %v383 = vsel %vm369, %v276, 0
        %v386 = vsel %vm369, %v277, 0
        %v389 = vsel %vm369, %v278, 0
        %v392 = vsel %vm369, %v279, 0
        %v395 = vsel %vm369, %v288, 0
        %v398 = vsel %vm369, %v289, 0
        %v401 = vsel %vm369, %v290, 0
        %v404 = vsel %vm369, %v291, 0
        %v407 = vsel %vm369, %v292, 0
        %v410 = vsel %vm369, %v293, 0
        %v413 = vsel %vm369, %v294, 0
        %v416 = vsel %vm369, %v295, 0
        %v419 = vsel %vm369, %v304, 0
        %v422 = vsel %vm369, %v305, 0
        %v425 = vsel %vm369, %v306, 0
        %v428 = vsel %vm369, %v307, 0
        %v431 = vsel %vm369, %v308, 0
        %v434 = vsel %vm369, %v309, 0
        %v437 = vsel %vm369, %v310, 0
        %v440 = vsel %vm369, %v311, 0
        %v443 = vsel %vm369, %v320, 0
        %v446 = vsel %vm369, %v321, 0
        %v449 = vsel %vm369, %v322, 0
        %v452 = vsel %vm369, %v323, 0
        %v455 = vsel %vm369, %v324, 0
        %v458 = vsel %vm369, %v325, 0
        %v461 = vsel %vm369, %v326, 0
        %v464 = vsel %vm369, %v327, 0
        %v467 = vsel %vm369, %v336, 0
        %v470 = vsel %vm369, %v337, 0
        %v473 = vsel %vm369, %v338, 0
        %v476 = vsel %vm369, %v339, 0
        %v479 = vsel %vm369, %v340, 0
        %v482 = vsel %vm369, %v341, 0
        %v485 = vsel %vm369, %v342, 0
        %v488 = vsel %vm369, %v343, 0
        %v491 = vsel %vm369, %v352, 0
        %v494 = vsel %vm369, %v353, 0
        %v497 = vsel %vm369, %v354, 0
        %v500 = vsel %vm369, %v355, 0
        %v503 = vsel %vm369, %v356, 0
        %v506 = vsel %vm369, %v357, 0
        %v509 = vsel %vm369, %v358, 0
        %v512 = vsel %vm369, %v359, 0
        %vm514 = vcmask 1041408
        %v516 = vsel %vm514, %v367, 0
        %v519 = vsel %vm514, %v368, 0
        %521 = vmatprep.subr.bf16.mxu0 %v519
        %522 = vmatpush1.bf16.msra.mxu0 %v516
        %523 = vmatprep.subr.bf16.mxu0 0
        %524 = vmatpush1.bf16.msra.mxu0 0
        %525 = vmatprep.subr.bf16.mxu0 0
        %526 = vmatpush1.bf16.msra.mxu0 0
        %527 = vmatprep.subr.bf16.mxu0 0
        %528 = vmatpush1.bf16.msra.mxu0 0
        %529 = vmatprep.subr.bf16.mxu0 0
        %530 = vmatpush1.bf16.msra.mxu0 0
        %531 = vmatprep.subr.bf16.mxu0 0
        %532 = vmatpush1.bf16.msra.mxu0 0
        %533 = vmatprep.subr.bf16.mxu0 0
        %534 = vmatpush1.bf16.msra.mxu0 0
        %535 = vmatprep.subr.bf16.mxu0 0
        %536 = vmatpush1.bf16.msra.mxu0 0
        %537 = vmatprep.subr.bf16.mxu0 0
        %538 = vmatpush1.bf16.msra.mxu0 0
        %539 = vmatprep.subr.bf16.mxu0 0
        %540 = vmatpush1.bf16.msra.mxu0 0
        %541 = vmatprep.subr.bf16.mxu0 0
        %542 = vmatpush1.bf16.msra.mxu0 0
        %543 = vmatprep.subr.bf16.mxu0 0
        %544 = vmatpush1.bf16.msra.mxu0 0
        %545 = vmatprep.subr.bf16.mxu0 0
        %546 = vmatpush1.bf16.msra.mxu0 0
        %547 = vmatprep.subr.bf16.mxu0 0
        %548 = vmatpush1.bf16.msra.mxu0 0
        %549 = vmatprep.subr.bf16.mxu0 0
        %550 = vmatpush1.bf16.msra.mxu0 0
        %551 = vmatprep.subr.bf16.mxu0 0
        %552 = vmatpush1.bf16.msra.mxu0 0
        %553 = vmatprep.mubr.bf16.mxu0 0
        %554 = vmatmul.mubr.bf16.gmra.mrb[0].mxu0 %v371
        %v555 = vpop.f32.mrb[0].mxu0
        %v556 = vadd.f32 0.0, %v555
        %v557 = vpop.f32.mrb[0].mxu0
        %v558 = vadd.f32 0.0, %v557
        %v559 = vpop.f32.mrb[0].mxu0
        %v560 = vadd.f32 0.0, %v559
        %v561 = vpop.f32.mrb[0].mxu0
        %v562 = vadd.f32 0.0, %v561
        %563 = vmatprep.mubr.bf16.mxu0 0
        %564 = vmatmul.mubr.bf16.gmra.mrb[0].mxu0 %v374
        %v565 = vpop.f32.mrb[0].mxu0
        %v566 = vadd.f32 0.0, %v565
        %v567 = vpop.f32.mrb[0].mxu0
        %v568 = vadd.f32 0.0, %v567
        %v569 = vpop.f32.mrb[0].mxu0
        %v570 = vadd.f32 0.0, %v569
        %v571 = vpop.f32.mrb[0].mxu0
        %v572 = vadd.f32 0.0, %v571
        %573 = vmatprep.mubr.bf16.mxu0 0
        %574 = vmatmul.mubr.bf16.gmra.mrb[0].mxu0 %v377
        %v575 = vpop.f32.mrb[0].mxu0
        %v576 = vadd.f32 0.0, %v575
        %v577 = vpop.f32.mrb[0].mxu0
        %v578 = vadd.f32 0.0, %v577
        %v579 = vpop.f32.mrb[0].mxu0
        %v580 = vadd.f32 0.0, %v579
        %v581 = vpop.f32.mrb[0].mxu0
        %v582 = vadd.f32 0.0, %v581
        %583 = vmatprep.mubr.bf16.mxu0 0
        %584 = vmatmul.mubr.bf16.gmra.mrb[0].mxu0 %v380
        %v585 = vpop.f32.mrb[0].mxu0
        %v586 = vadd.f32 0.0, %v585
        %v587 = vpop.f32.mrb[0].mxu0
        %v588 = vadd.f32 0.0, %v587
        %v589 = vpop.f32.mrb[0].mxu0
        %v590 = vadd.f32 0.0, %v589
        %v591 = vpop.f32.mrb[0].mxu0
        %v592 = vadd.f32 0.0, %v591
        %593 = vmatprep.mubr.bf16.mxu0 0
        %594 = vmatmul.mubr.bf16.gmra.mrb[0].mxu0 %v383
        %v595 = vpop.f32.mrb[0].mxu0
        %v596 = vadd.f32 0.0, %v595
        %v597 = vpop.f32.mrb[0].mxu0
        %v598 = vadd.f32 0.0, %v597
        %v599 = vpop.f32.mrb[0].mxu0
        %v600 = vadd.f32 0.0, %v599
        %v601 = vpop.f32.mrb[0].mxu0
        %v602 = vadd.f32 0.0, %v601
        %603 = vmatprep.mubr.bf16.mxu0 0
        %604 = vmatmul.mubr.bf16.gmra.mrb[0].mxu0 %v386
        %v605 = vpop.f32.mrb[0].mxu0
        %v606 = vadd.f32 0.0, %v605
        %v607 = vpop.f32.mrb[0].mxu0
        %v608 = vadd.f32 0.0, %v607
        %v609 = vpop.f32.mrb[0].mxu0
        %v610 = vadd.f32 0.0, %v609
        %v611 = vpop.f32.mrb[0].mxu0
        %v612 = vadd.f32 0.0, %v611
        %613 = vmatprep.mubr.bf16.mxu0 0
        %614 = vmatmul.mubr.bf16.gmra.mrb[0].mxu0 %v389
        %v615 = vpop.f32.mrb[0].mxu0
        %v616 = vadd.f32 0.0, %v615
        %v617 = vpop.f32.mrb[0].mxu0
        %v618 = vadd.f32 0.0, %v617
        %v619 = vpop.f32.mrb[0].mxu0
        %v620 = vadd.f32 0.0, %v619
        %v621 = vpop.f32.mrb[0].mxu0
        %v622 = vadd.f32 0.0, %v621
        %623 = vmatprep.mubr.bf16.mxu0 0
        %624 = vmatmul.mubr.bf16.gmra.mrb[0].mxu0 %v392
        %v625 = vpop.f32.mrb[0].mxu0
        %v626 = vadd.f32 0.0, %v625
        %v627 = vpop.f32.mrb[0].mxu0
        %v628 = vadd.f32 0.0, %v627
        %v629 = vpop.f32.mrb[0].mxu0
        %v630 = vadd.f32 0.0, %v629
        %v631 = vpop.f32.mrb[0].mxu0
        %v632 = vadd.f32 0.0, %v631
        %633 = vmatprep.mubr.bf16.mxu0 0
        %634 = vmatmul.mubr.bf16.gmra.mrb[0].mxu0 %v395
        %v635 = vpop.f32.mrb[0].mxu0
        %v636 = vadd.f32 0.0, %v635
        %v637 = vpop.f32.mrb[0].mxu0
        %v638 = vadd.f32 0.0, %v637
        %v639 = vpop.f32.mrb[0].mxu0
        %v640 = vadd.f32 0.0, %v639
        %v641 = vpop.f32.mrb[0].mxu0
        %v642 = vadd.f32 0.0, %v641
        %643 = vmatprep.mubr.bf16.mxu0 0
        %644 = vmatmul.mubr.bf16.gmra.mrb[0].mxu0 %v398
        %v645 = vpop.f32.mrb[0].mxu0
        %v646 = vadd.f32 0.0, %v645
        %v647 = vpop.f32.mrb[0].mxu0
        %v648 = vadd.f32 0.0, %v647
        %v649 = vpop.f32.mrb[0].mxu0
        %v650 = vadd.f32 0.0, %v649
        %v651 = vpop.f32.mrb[0].mxu0
        %v652 = vadd.f32 0.0, %v651
        %653 = vmatprep.mubr.bf16.mxu0 0
        %654 = vmatmul.mubr.bf16.gmra.mrb[0].mxu0 %v401
        %v655 = vpop.f32.mrb[0].mxu0
        %v656 = vadd.f32 0.0, %v655
        %v657 = vpop.f32.mrb[0].mxu0
        %v658 = vadd.f32 0.0, %v657
        %v659 = vpop.f32.mrb[0].mxu0
        %v660 = vadd.f32 0.0, %v659
        %v661 = vpop.f32.mrb[0].mxu0
        %v662 = vadd.f32 0.0, %v661
        %663 = vmatprep.mubr.bf16.mxu0 0
        %664 = vmatmul.mubr.bf16.gmra.mrb[0].mxu0 %v404
        %v665 = vpop.f32.mrb[0].mxu0
        %v666 = vadd.f32 0.0, %v665
        %v667 = vpop.f32.mrb[0].mxu0
        %v668 = vadd.f32 0.0, %v667
        %v669 = vpop.f32.mrb[0].mxu0
        %v670 = vadd.f32 0.0, %v669
        %v671 = vpop.f32.mrb[0].mxu0
        %v672 = vadd.f32 0.0, %v671
        %673 = vmatprep.mubr.bf16.mxu0 0
        %674 = vmatmul.mubr.bf16.gmra.mrb[0].mxu0 %v407
        %v675 = vpop.f32.mrb[0].mxu0
        %v676 = vadd.f32 0.0, %v675
        %v677 = vpop.f32.mrb[0].mxu0
        %v678 = vadd.f32 0.0, %v677
        %v679 = vpop.f32.mrb[0].mxu0
        %v680 = vadd.f32 0.0, %v679
        %v681 = vpop.f32.mrb[0].mxu0
        %v682 = vadd.f32 0.0, %v681
        %683 = vmatprep.mubr.bf16.mxu0 0
        %684 = vmatmul.mubr.bf16.gmra.mrb[0].mxu0 %v410
        %v685 = vpop.f32.mrb[0].mxu0
        %v686 = vadd.f32 0.0, %v685
        %v687 = vpop.f32.mrb[0].mxu0
        %v688 = vadd.f32 0.0, %v687
        %v689 = vpop.f32.mrb[0].mxu0
        %v690 = vadd.f32 0.0, %v689
        %v691 = vpop.f32.mrb[0].mxu0
        %v692 = vadd.f32 0.0, %v691
        %693 = vmatprep.mubr.bf16.mxu0 0
        %694 = vmatmul.mubr.bf16.gmra.mrb[0].mxu0 %v413
        %v695 = vpop.f32.mrb[0].mxu0
        %v696 = vadd.f32 0.0, %v695
        %v697 = vpop.f32.mrb[0].mxu0
        %v698 = vadd.f32 0.0, %v697
        %v699 = vpop.f32.mrb[0].mxu0
        %v700 = vadd.f32 0.0, %v699
        %v701 = vpop.f32.mrb[0].mxu0
        %v702 = vadd.f32 0.0, %v701
        %703 = vmatprep.mubr.bf16.mxu0 0
        %704 = vmatmul.mubr.bf16.gmra.mrb[0].mxu0 %v416
        %v705 = vpop.f32.mrb[0].mxu0
        %v706 = vadd.f32 0.0, %v705
        %v707 = vpop.f32.mrb[0].mxu0
        %v708 = vadd.f32 0.0, %v707
        %v709 = vpop.f32.mrb[0].mxu0
        %v710 = vadd.f32 0.0, %v709
        %v711 = vpop.f32.mrb[0].mxu0
        %v712 = vadd.f32 0.0, %v711
        %713 = vmatprep.mubr.bf16.mxu0 0
        %714 = vmatmul.mubr.bf16.gmra.mrb[0].mxu0 %v419
        %v715 = vpop.f32.mrb[0].mxu0
        %v716 = vadd.f32 0.0, %v715
        %v717 = vpop.f32.mrb[0].mxu0
        %v718 = vadd.f32 0.0, %v717
        %v719 = vpop.f32.mrb[0].mxu0
        %v720 = vadd.f32 0.0, %v719
        %v721 = vpop.f32.mrb[0].mxu0
        %v722 = vadd.f32 0.0, %v721
        %723 = vmatprep.mubr.bf16.mxu0 0
        %724 = vmatmul.mubr.bf16.gmra.mrb[0].mxu0 %v422
        %v725 = vpop.f32.mrb[0].mxu0
        %v726 = vadd.f32 0.0, %v725
        %v727 = vpop.f32.mrb[0].mxu0
        %v728 = vadd.f32 0.0, %v727
        %v729 = vpop.f32.mrb[0].mxu0
        %v730 = vadd.f32 0.0, %v729
        %v731 = vpop.f32.mrb[0].mxu0
        %v732 = vadd.f32 0.0, %v731
        %733 = vmatprep.mubr.bf16.mxu0 0
        %734 = vmatmul.mubr.bf16.gmra.mrb[0].mxu0 %v425
        %v735 = vpop.f32.mrb[0].mxu0
        %v736 = vadd.f32 0.0, %v735
        %v737 = vpop.f32.mrb[0].mxu0
        %v738 = vadd.f32 0.0, %v737
        %v739 = vpop.f32.mrb[0].mxu0
        %v740 = vadd.f32 0.0, %v739
        %v741 = vpop.f32.mrb[0].mxu0
        %v742 = vadd.f32 0.0, %v741
        %743 = vmatprep.mubr.bf16.mxu0 0
        %744 = vmatmul.mubr.bf16.gmra.mrb[0].mxu0 %v428
        %v745 = vpop.f32.mrb[0].mxu0
        %v746 = vadd.f32 0.0, %v745
        %v747 = vpop.f32.mrb[0].mxu0
        %v748 = vadd.f32 0.0, %v747
        %v749 = vpop.f32.mrb[0].mxu0
        %v750 = vadd.f32 0.0, %v749
        %v751 = vpop.f32.mrb[0].mxu0
        %v752 = vadd.f32 0.0, %v751
        %753 = vmatprep.mubr.bf16.mxu0 0
        %754 = vmatmul.mubr.bf16.gmra.mrb[0].mxu0 %v431
        %v755 = vpop.f32.mrb[0].mxu0
        %v756 = vadd.f32 0.0, %v755
        %v757 = vpop.f32.mrb[0].mxu0
        %v758 = vadd.f32 0.0, %v757
        %v759 = vpop.f32.mrb[0].mxu0
        %v760 = vadd.f32 0.0, %v759
        %v761 = vpop.f32.mrb[0].mxu0
        %v762 = vadd.f32 0.0, %v761
        %763 = vmatprep.mubr.bf16.mxu0 0
        %764 = vmatmul.mubr.bf16.gmra.mrb[0].mxu0 %v434
        %v765 = vpop.f32.mrb[0].mxu0
        %v766 = vadd.f32 0.0, %v765
        %v767 = vpop.f32.mrb[0].mxu0
        %v768 = vadd.f32 0.0, %v767
        %v769 = vpop.f32.mrb[0].mxu0
        %v770 = vadd.f32 0.0, %v769
        %v771 = vpop.f32.mrb[0].mxu0
        %v772 = vadd.f32 0.0, %v771
        %773 = vmatprep.mubr.bf16.mxu0 0
        %774 = vmatmul.mubr.bf16.gmra.mrb[0].mxu0 %v437
        %v775 = vpop.f32.mrb[0].mxu0
        %v776 = vadd.f32 0.0, %v775
        %v777 = vpop.f32.mrb[0].mxu0
        %v778 = vadd.f32 0.0, %v777
        %v779 = vpop.f32.mrb[0].mxu0
        %v780 = vadd.f32 0.0, %v779
        %v781 = vpop.f32.mrb[0].mxu0
        %v782 = vadd.f32 0.0, %v781
        %783 = vmatprep.mubr.bf16.mxu0 0
        %784 = vmatmul.mubr.bf16.gmra.mrb[0].mxu0 %v440
        %v785 = vpop.f32.mrb[0].mxu0
        %v786 = vadd.f32 0.0, %v785
        %v787 = vpop.f32.mrb[0].mxu0
        %v788 = vadd.f32 0.0, %v787
        %v789 = vpop.f32.mrb[0].mxu0
        %v790 = vadd.f32 0.0, %v789
        %v791 = vpop.f32.mrb[0].mxu0
        %v792 = vadd.f32 0.0, %v791
        %793 = vmatprep.mubr.bf16.mxu0 0
        %794 = vmatmul.mubr.bf16.gmra.mrb[0].mxu0 %v443
        %v795 = vpop.f32.mrb[0].mxu0
        %v796 = vadd.f32 0.0, %v795
        %v797 = vpop.f32.mrb[0].mxu0
        %v798 = vadd.f32 0.0, %v797
        %v799 = vpop.f32.mrb[0].mxu0
        %v800 = vadd.f32 0.0, %v799
        %v801 = vpop.f32.mrb[0].mxu0
        %v802 = vadd.f32 0.0, %v801
        %803 = vmatprep.mubr.bf16.mxu0 0
        %804 = vmatmul.mubr.bf16.gmra.mrb[0].mxu0 %v446
        %v805 = vpop.f32.mrb[0].mxu0
        %v806 = vadd.f32 0.0, %v805
        %v807 = vpop.f32.mrb[0].mxu0
        %v808 = vadd.f32 0.0, %v807
        %v809 = vpop.f32.mrb[0].mxu0
        %v810 = vadd.f32 0.0, %v809
        %v811 = vpop.f32.mrb[0].mxu0
        %v812 = vadd.f32 0.0, %v811
        %813 = vmatprep.mubr.bf16.mxu0 0
        %814 = vmatmul.mubr.bf16.gmra.mrb[0].mxu0 %v449
        %v815 = vpop.f32.mrb[0].mxu0
        %v816 = vadd.f32 0.0, %v815
        %v817 = vpop.f32.mrb[0].mxu0
        %v818 = vadd.f32 0.0, %v817
        %v819 = vpop.f32.mrb[0].mxu0
        %v820 = vadd.f32 0.0, %v819
        %v821 = vpop.f32.mrb[0].mxu0
        %v822 = vadd.f32 0.0, %v821
        %823 = vmatprep.mubr.bf16.mxu0 0
        %824 = vmatmul.mubr.bf16.gmra.mrb[0].mxu0 %v452
        %v825 = vpop.f32.mrb[0].mxu0
        %v826 = vadd.f32 0.0, %v825
        %v827 = vpop.f32.mrb[0].mxu0
        %v828 = vadd.f32 0.0, %v827
        %v829 = vpop.f32.mrb[0].mxu0
        %v830 = vadd.f32 0.0, %v829
        %v831 = vpop.f32.mrb[0].mxu0
        %v832 = vadd.f32 0.0, %v831
        %833 = vmatprep.mubr.bf16.mxu0 0
        %834 = vmatmul.mubr.bf16.gmra.mrb[0].mxu0 %v455
        %v835 = vpop.f32.mrb[0].mxu0
        %v836 = vadd.f32 0.0, %v835
        %v837 = vpop.f32.mrb[0].mxu0
        %v838 = vadd.f32 0.0, %v837
        %v839 = vpop.f32.mrb[0].mxu0
        %v840 = vadd.f32 0.0, %v839
        %v841 = vpop.f32.mrb[0].mxu0
        %v842 = vadd.f32 0.0, %v841
        %843 = vmatprep.mubr.bf16.mxu0 0
        %844 = vmatmul.mubr.bf16.gmra.mrb[0].mxu0 %v458
        %v845 = vpop.f32.mrb[0].mxu0
        %v846 = vadd.f32 0.0, %v845
        %v847 = vpop.f32.mrb[0].mxu0
        %v848 = vadd.f32 0.0, %v847
        %v849 = vpop.f32.mrb[0].mxu0
        %v850 = vadd.f32 0.0, %v849
        %v851 = vpop.f32.mrb[0].mxu0
        %v852 = vadd.f32 0.0, %v851
        %853 = vmatprep.mubr.bf16.mxu0 0
        %854 = vmatmul.mubr.bf16.gmra.mrb[0].mxu0 %v461
        %v855 = vpop.f32.mrb[0].mxu0
        %v856 = vadd.f32 0.0, %v855
        %v857 = vpop.f32.mrb[0].mxu0
        %v858 = vadd.f32 0.0, %v857
        %v859 = vpop.f32.mrb[0].mxu0
        %v860 = vadd.f32 0.0, %v859
        %v861 = vpop.f32.mrb[0].mxu0
        %v862 = vadd.f32 0.0, %v861
        %863 = vmatprep.mubr.bf16.mxu0 0
        %864 = vmatmul.mubr.bf16.gmra.mrb[0].mxu0 %v464
        %v865 = vpop.f32.mrb[0].mxu0
        %v866 = vadd.f32 0.0, %v865
        %v867 = vpop.f32.mrb[0].mxu0
        %v868 = vadd.f32 0.0, %v867
        %v869 = vpop.f32.mrb[0].mxu0
        %v870 = vadd.f32 0.0, %v869
        %v871 = vpop.f32.mrb[0].mxu0
        %v872 = vadd.f32 0.0, %v871
        %873 = vmatprep.mubr.bf16.mxu0 0
        %874 = vmatmul.mubr.bf16.gmra.mrb[0].mxu0 %v467
        %v875 = vpop.f32.mrb[0].mxu0
        %v876 = vadd.f32 0.0, %v875
        %v877 = vpop.f32.mrb[0].mxu0
        %v878 = vadd.f32 0.0, %v877
        %v879 = vpop.f32.mrb[0].mxu0
        %v880 = vadd.f32 0.0, %v879
        %v881 = vpop.f32.mrb[0].mxu0
        %v882 = vadd.f32 0.0, %v881
        %883 = vmatprep.mubr.bf16.mxu0 0
        %884 = vmatmul.mubr.bf16.gmra.mrb[0].mxu0 %v470
        %v885 = vpop.f32.mrb[0].mxu0
        %v886 = vadd.f32 0.0, %v885
        %v887 = vpop.f32.mrb[0].mxu0
        %v888 = vadd.f32 0.0, %v887
        %v889 = vpop.f32.mrb[0].mxu0
        %v890 = vadd.f32 0.0, %v889
        %v891 = vpop.f32.mrb[0].mxu0
        %v892 = vadd.f32 0.0, %v891
        %893 = vmatprep.mubr.bf16.mxu0 0
        %894 = vmatmul.mubr.bf16.gmra.mrb[0].mxu0 %v473
        %v895 = vpop.f32.mrb[0].mxu0
        %v896 = vadd.f32 0.0, %v895
        %v897 = vpop.f32.mrb[0].mxu0
        %v898 = vadd.f32 0.0, %v897
        %v899 = vpop.f32.mrb[0].mxu0
        %v900 = vadd.f32 0.0, %v899
        %v901 = vpop.f32.mrb[0].mxu0
        %v902 = vadd.f32 0.0, %v901
        %903 = vmatprep.mubr.bf16.mxu0 0
        %904 = vmatmul.mubr.bf16.gmra.mrb[0].mxu0 %v476
        %v905 = vpop.f32.mrb[0].mxu0
        %v906 = vadd.f32 0.0, %v905
        %v907 = vpop.f32.mrb[0].mxu0
        %v908 = vadd.f32 0.0, %v907
        %v909 = vpop.f32.mrb[0].mxu0
        %v910 = vadd.f32 0.0, %v909
        %v911 = vpop.f32.mrb[0].mxu0
        %v912 = vadd.f32 0.0, %v911
        %913 = vmatprep.mubr.bf16.mxu0 0
        %914 = vmatmul.mubr.bf16.gmra.mrb[0].mxu0 %v479
        %v915 = vpop.f32.mrb[0].mxu0
        %v916 = vadd.f32 0.0, %v915
        %v917 = vpop.f32.mrb[0].mxu0
        %v918 = vadd.f32 0.0, %v917
        %v919 = vpop.f32.mrb[0].mxu0
        %v920 = vadd.f32 0.0, %v919
        %v921 = vpop.f32.mrb[0].mxu0
        %v922 = vadd.f32 0.0, %v921
        %923 = vmatprep.mubr.bf16.mxu0 0
        %924 = vmatmul.mubr.bf16.gmra.mrb[0].mxu0 %v482
        %v925 = vpop.f32.mrb[0].mxu0
        %v926 = vadd.f32 0.0, %v925
        %v927 = vpop.f32.mrb[0].mxu0
        %v928 = vadd.f32 0.0, %v927
        %v929 = vpop.f32.mrb[0].mxu0
        %v930 = vadd.f32 0.0, %v929
        %v931 = vpop.f32.mrb[0].mxu0
        %v932 = vadd.f32 0.0, %v931
        %933 = vmatprep.mubr.bf16.mxu0 0
        %934 = vmatmul.mubr.bf16.gmra.mrb[0].mxu0 %v485
        %v935 = vpop.f32.mrb[0].mxu0
        %v936 = vadd.f32 0.0, %v935
        %v937 = vpop.f32.mrb[0].mxu0
        %v938 = vadd.f32 0.0, %v937
        %v939 = vpop.f32.mrb[0].mxu0
        %v940 = vadd.f32 0.0, %v939
        %v941 = vpop.f32.mrb[0].mxu0
        %v942 = vadd.f32 0.0, %v941
        %943 = vmatprep.mubr.bf16.mxu0 0
        %944 = vmatmul.mubr.bf16.gmra.mrb[0].mxu0 %v488
        %v945 = vpop.f32.mrb[0].mxu0
        %v946 = vadd.f32 0.0, %v945
        %v947 = vpop.f32.mrb[0].mxu0
        %v948 = vadd.f32 0.0, %v947
        %v949 = vpop.f32.mrb[0].mxu0
        %v950 = vadd.f32 0.0, %v949
        %v951 = vpop.f32.mrb[0].mxu0
        %v952 = vadd.f32 0.0, %v951
        %953 = vmatprep.mubr.bf16.mxu0 0
        %954 = vmatmul.mubr.bf16.gmra.mrb[0].mxu0 %v491
        %v955 = vpop.f32.mrb[0].mxu0
        %v956 = vadd.f32 0.0, %v955
        %v957 = vpop.f32.mrb[0].mxu0
        %v958 = vadd.f32 0.0, %v957
        %v959 = vpop.f32.mrb[0].mxu0
        %v960 = vadd.f32 0.0, %v959
        %v961 = vpop.f32.mrb[0].mxu0
        %v962 = vadd.f32 0.0, %v961
        %963 = vmatprep.mubr.bf16.mxu0 0
        %964 = vmatmul.mubr.bf16.gmra.mrb[0].mxu0 %v494
        %v965 = vpop.f32.mrb[0].mxu0
        %v966 = vadd.f32 0.0, %v965
        %v967 = vpop.f32.mrb[0].mxu0
        %v968 = vadd.f32 0.0, %v967
        %v969 = vpop.f32.mrb[0].mxu0
        %v970 = vadd.f32 0.0, %v969
        %v971 = vpop.f32.mrb[0].mxu0
        %v972 = vadd.f32 0.0, %v971
        %973 = vmatprep.mubr.bf16.mxu0 0
        %974 = vmatmul.mubr.bf16.gmra.mrb[0].mxu0 %v497
        %v975 = vpop.f32.mrb[0].mxu0
        %v976 = vadd.f32 0.0, %v975
        %v977 = vpop.f32.mrb[0].mxu0
        %v978 = vadd.f32 0.0, %v977
        %v979 = vpop.f32.mrb[0].mxu0
        %v980 = vadd.f32 0.0, %v979
        %v981 = vpop.f32.mrb[0].mxu0
        %v982 = vadd.f32 0.0, %v981
        %983 = vmatprep.mubr.bf16.mxu0 0
        %984 = vmatmul.mubr.bf16.gmra.mrb[0].mxu0 %v500
        %v985 = vpop.f32.mrb[0].mxu0
        %v986 = vadd.f32 0.0, %v985
        %v987 = vpop.f32.mrb[0].mxu0
        %v988 = vadd.f32 0.0, %v987
        %v989 = vpop.f32.mrb[0].mxu0
        %v990 = vadd.f32 0.0, %v989
        %v991 = vpop.f32.mrb[0].mxu0
        %v992 = vadd.f32 0.0, %v991
        %993 = vmatprep.mubr.bf16.mxu0 0
        %994 = vmatmul.mubr.bf16.gmra.mrb[0].mxu0 %v503
        %v995 = vpop.f32.mrb[0].mxu0
        %v996 = vadd.f32 0.0, %v995
        %v997 = vpop.f32.mrb[0].mxu0
        %v998 = vadd.f32 0.0, %v997
        %v999 = vpop.f32.mrb[0].mxu0
        %v1000 = vadd.f32 0.0, %v999
        %v1001 = vpop.f32.mrb[0].mxu0
        %v1002 = vadd.f32 0.0, %v1001
        %1003 = vmatprep.mubr.bf16.mxu0 0
        %1004 = vmatmul.mubr.bf16.gmra.mrb[0].mxu0 %v506
        %v1005 = vpop.f32.mrb[0].mxu0
        %v1006 = vadd.f32 0.0, %v1005
        %v1007 = vpop.f32.mrb[0].mxu0
        %v1008 = vadd.f32 0.0, %v1007
        %v1009 = vpop.f32.mrb[0].mxu0
        %v1010 = vadd.f32 0.0, %v1009
        %v1011 = vpop.f32.mrb[0].mxu0
        %v1012 = vadd.f32 0.0, %v1011
        %1013 = vmatprep.mubr.bf16.mxu0 0
        %1014 = vmatmul.mubr.bf16.gmra.mrb[0].mxu0 %v509
        %v1015 = vpop.f32.mrb[0].mxu0
        %v1016 = vadd.f32 0.0, %v1015
        %v1017 = vpop.f32.mrb[0].mxu0
        %v1018 = vadd.f32 0.0, %v1017
        %v1019 = vpop.f32.mrb[0].mxu0
        %v1020 = vadd.f32 0.0, %v1019
        %v1021 = vpop.f32.mrb[0].mxu0
        %v1022 = vadd.f32 0.0, %v1021
        %1023 = vmatprep.mubr.bf16.mxu0 0
        %1024 = vmatmul.mubr.bf16.gmra.mrb[0].mxu0 %v512
        %v1025 = vpop.f32.mrb[0].mxu0
        %v1026 = vadd.f32 0.0, %v1025
        %v1027 = vpop.f32.mrb[0].mxu0
        %v1028 = vadd.f32 0.0, %v1027
        %v1029 = vpop.f32.mrb[0].mxu0
        %v1030 = vadd.f32 0.0, %v1029
        %v1031 = vpop.f32.mrb[0].mxu0
        %v1032 = vadd.f32 0.0, %v1031
        %1033 = vdwg.mxu0
        %v1034 = vpack.c.bf16 %v560, %v556
        %v1035 = vpack.c.bf16 %v562, %v558
        %v1036 = vpack.c.bf16 %v570, %v566
        %v1037 = vpack.c.bf16 %v572, %v568
        %v1038 = vpack.c.bf16 %v580, %v576
        %v1039 = vpack.c.bf16 %v582, %v578
        %v1040 = vpack.c.bf16 %v590, %v586
        %v1041 = vpack.c.bf16 %v592, %v588
        %v1042 = vpack.c.bf16 %v600, %v596
        %v1043 = vpack.c.bf16 %v602, %v598
        %v1044 = vpack.c.bf16 %v610, %v606
        %v1045 = vpack.c.bf16 %v612, %v608
        %v1046 = vpack.c.bf16 %v620, %v616
        %v1047 = vpack.c.bf16 %v622, %v618
        %v1048 = vpack.c.bf16 %v630, %v626
        %v1049 = vpack.c.bf16 %v632, %v628
        %v1050 = vpack.c.bf16 %v640, %v636
        %v1051 = vpack.c.bf16 %v642, %v638
        %v1052 = vpack.c.bf16 %v650, %v646
        %v1053 = vpack.c.bf16 %v652, %v648
        %v1054 = vpack.c.bf16 %v660, %v656
        %v1055 = vpack.c.bf16 %v662, %v658
        %v1056 = vpack.c.bf16 %v670, %v666
        %v1057 = vpack.c.bf16 %v672, %v668
        %v1058 = vpack.c.bf16 %v680, %v676
        %v1059 = vpack.c.bf16 %v682, %v678
        %v1060 = vpack.c.bf16 %v690, %v686
        %v1061 = vpack.c.bf16 %v692, %v688
        %v1062 = vpack.c.bf16 %v700, %v696
        %v1063 = vpack.c.bf16 %v702, %v698
        %v1064 = vpack.c.bf16 %v710, %v706
        %v1065 = vpack.c.bf16 %v712, %v708
        %v1066 = vpack.c.bf16 %v720, %v716
        %v1067 = vpack.c.bf16 %v722, %v718
        %v1068 = vpack.c.bf16 %v730, %v726
        %v1069 = vpack.c.bf16 %v732, %v728
        %v1070 = vpack.c.bf16 %v740, %v736
        %v1071 = vpack.c.bf16 %v742, %v738
        %v1072 = vpack.c.bf16 %v750, %v746
        %v1073 = vpack.c.bf16 %v752, %v748
        %v1074 = vpack.c.bf16 %v760, %v756
        %v1075 = vpack.c.bf16 %v762, %v758
        %v1076 = vpack.c.bf16 %v770, %v766
        %v1077 = vpack.c.bf16 %v772, %v768
        %v1078 = vpack.c.bf16 %v780, %v776
        %v1079 = vpack.c.bf16 %v782, %v778
        %v1080 = vpack.c.bf16 %v790, %v786
        %v1081 = vpack.c.bf16 %v792, %v788
        %v1082 = vpack.c.bf16 %v800, %v796
        %v1083 = vpack.c.bf16 %v802, %v798
        %v1084 = vpack.c.bf16 %v810, %v806
        %v1085 = vpack.c.bf16 %v812, %v808
        %v1086 = vpack.c.bf16 %v820, %v816
        %v1087 = vpack.c.bf16 %v822, %v818
        %v1088 = vpack.c.bf16 %v830, %v826
        %v1089 = vpack.c.bf16 %v832, %v828
        %v1090 = vpack.c.bf16 %v840, %v836
        %v1091 = vpack.c.bf16 %v842, %v838
        %v1092 = vpack.c.bf16 %v850, %v846
        %v1093 = vpack.c.bf16 %v852, %v848
        %v1094 = vpack.c.bf16 %v860, %v856
        %v1095 = vpack.c.bf16 %v862, %v858
        %v1096 = vpack.c.bf16 %v870, %v866
        %v1097 = vpack.c.bf16 %v872, %v868
        %v1098 = vpack.c.bf16 %v880, %v876
        %v1099 = vpack.c.bf16 %v882, %v878
        %v1100 = vpack.c.bf16 %v890, %v886
        %v1101 = vpack.c.bf16 %v892, %v888
        %v1102 = vpack.c.bf16 %v900, %v896
        %v1103 = vpack.c.bf16 %v902, %v898
        %v1104 = vpack.c.bf16 %v910, %v906
        %v1105 = vpack.c.bf16 %v912, %v908
        %v1106 = vpack.c.bf16 %v920, %v916
        %v1107 = vpack.c.bf16 %v922, %v918
        %v1108 = vpack.c.bf16 %v930, %v926
        %v1109 = vpack.c.bf16 %v932, %v928
        %v1110 = vpack.c.bf16 %v940, %v936
        %v1111 = vpack.c.bf16 %v942, %v938
        %v1112 = vpack.c.bf16 %v950, %v946
        %v1113 = vpack.c.bf16 %v952, %v948
        %v1114 = vpack.c.bf16 %v960, %v956
        %v1115 = vpack.c.bf16 %v962, %v958
        %v1116 = vpack.c.bf16 %v970, %v966
        %v1117 = vpack.c.bf16 %v972, %v968
        %v1118 = vpack.c.bf16 %v980, %v976
        %v1119 = vpack.c.bf16 %v982, %v978
        %v1120 = vpack.c.bf16 %v990, %v986
        %v1121 = vpack.c.bf16 %v992, %v988
        %v1122 = vpack.c.bf16 %v1000, %v996
        %v1123 = vpack.c.bf16 %v1002, %v998
        %v1124 = vpack.c.bf16 %v1010, %v1006
        %v1125 = vpack.c.bf16 %v1012, %v1008
        %v1126 = vpack.c.bf16 %v1020, %v1016
        %v1127 = vpack.c.bf16 %v1022, %v1018
        %v1128 = vpack.c.bf16 %v1030, %v1026
        %v1129 = vpack.c.bf16 %v1032, %v1028
        %1130 = vst [vmem:[#allocation2] sm:$0xff] %v1034
        %1131 = vst [vmem:[#allocation2 + $0x8] sm:$0xff] %v1035
        %1132 = vst [vmem:[#allocation2 + $0x10] sm:$0xff] %v1036
        %1133 = vst [vmem:[#allocation2 + $0x18] sm:$0xff] %v1037
        %1134 = vst [vmem:[#allocation2 + $0x20] sm:$0xff] %v1038
        %1135 = vst [vmem:[#allocation2 + $0x28] sm:$0xff] %v1039
        %1136 = vst [vmem:[#allocation2 + $0x30] sm:$0xff] %v1040
        %1137 = vst [vmem:[#allocation2 + $0x38] sm:$0xff] %v1041
        %1138 = vst [vmem:[#allocation2 + $0x40] sm:$0xff] %v1042
        %1139 = vst [vmem:[#allocation2 + $0x48] sm:$0xff] %v1043
        %1140 = vst [vmem:[#allocation2 + $0x50] sm:$0xff] %v1044
        %1141 = vst [vmem:[#allocation2 + $0x58] sm:$0xff] %v1045
        %1142 = vst [vmem:[#allocation2 + $0x60] sm:$0xff] %v1046
        %1143 = vst [vmem:[#allocation2 + $0x68] sm:$0xff] %v1047
        %1144 = vst [vmem:[#allocation2 + $0x70] sm:$0xff] %v1048
        %1145 = vst [vmem:[#allocation2 + $0x78] sm:$0xff] %v1049
        %1146 = vst [vmem:[#allocation2 + $0x80] sm:$0xff] %v1050
        %1147 = vst [vmem:[#allocation2 + $0x88] sm:$0xff] %v1051
        %1148 = vst [vmem:[#allocation2 + $0x90] sm:$0xff] %v1052
        %1149 = vst [vmem:[#allocation2 + $0x98] sm:$0xff] %v1053
        %1150 = vst [vmem:[#allocation2 + $0xa0] sm:$0xff] %v1054
        %1151 = vst [vmem:[#allocation2 + $0xa8] sm:$0xff] %v1055
        %1152 = vst [vmem:[#allocation2 + $0xb0] sm:$0xff] %v1056
        %1153 = vst [vmem:[#allocation2 + $0xb8] sm:$0xff] %v1057
        %1154 = vst [vmem:[#allocation2 + $0xc0] sm:$0xff] %v1058
        %1155 = vst [vmem:[#allocation2 + $0xc8] sm:$0xff] %v1059
        %1156 = vst [vmem:[#allocation2 + $0xd0] sm:$0xff] %v1060
        %1157 = vst [vmem:[#allocation2 + $0xd8] sm:$0xff] %v1061
        %1158 = vst [vmem:[#allocation2 + $0xe0] sm:$0xff] %v1062
        %1159 = vst [vmem:[#allocation2 + $0xe8] sm:$0xff] %v1063
        %1160 = vst [vmem:[#allocation2 + $0xf0] sm:$0xff] %v1064
        %1161 = vst [vmem:[#allocation2 + $0xf8] sm:$0xff] %v1065
        %1162 = vst [vmem:[#allocation2 + $0x100] sm:$0xff] %v1066
        %1163 = vst [vmem:[#allocation2 + $0x108] sm:$0xff] %v1067
        %1164 = vst [vmem:[#allocation2 + $0x110] sm:$0xff] %v1068
        %1165 = vst [vmem:[#allocation2 + $0x118] sm:$0xff] %v1069
        %1166 = vst [vmem:[#allocation2 + $0x120] sm:$0xff] %v1070
        %1167 = vst [vmem:[#allocation2 + $0x128] sm:$0xff] %v1071
        %1168 = vst [vmem:[#allocation2 + $0x130] sm:$0xff] %v1072
        %1169 = vst [vmem:[#allocation2 + $0x138] sm:$0xff] %v1073
        %1170 = vst [vmem:[#allocation2 + $0x140] sm:$0xff] %v1074
        %1171 = vst [vmem:[#allocation2 + $0x148] sm:$0xff] %v1075
        %1172 = vst [vmem:[#allocation2 + $0x150] sm:$0xff] %v1076
        %1173 = vst [vmem:[#allocation2 + $0x158] sm:$0xff] %v1077
        %1174 = vst [vmem:[#allocation2 + $0x160] sm:$0xff] %v1078
        %1175 = vst [vmem:[#allocation2 + $0x168] sm:$0xff] %v1079
        %1176 = vst [vmem:[#allocation2 + $0x170] sm:$0xff] %v1080
        %1177 = vst [vmem:[#allocation2 + $0x178] sm:$0xff] %v1081
        %1178 = vst [vmem:[#allocation2 + $0x180] sm:$0xff] %v1082
        %1179 = vst [vmem:[#allocation2 + $0x188] sm:$0xff] %v1083
        %1180 = vst [vmem:[#allocation2 + $0x190] sm:$0xff] %v1084
        %1181 = vst [vmem:[#allocation2 + $0x198] sm:$0xff] %v1085
        %1182 = vst [vmem:[#allocation2 + $0x1a0] sm:$0xff] %v1086
        %1183 = vst [vmem:[#allocation2 + $0x1a8] sm:$0xff] %v1087
        %1184 = vst [vmem:[#allocation2 + $0x1b0] sm:$0xff] %v1088
        %1185 = vst [vmem:[#allocation2 + $0x1b8] sm:$0xff] %v1089
        %1186 = vst [vmem:[#allocation2 + $0x1c0] sm:$0xff] %v1090
        %1187 = vst [vmem:[#allocation2 + $0x1c8] sm:$0xff] %v1091
        %1188 = vst [vmem:[#allocation2 + $0x1d0] sm:$0xff] %v1092
        %1189 = vst [vmem:[#allocation2 + $0x1d8] sm:$0xff] %v1093
        %1190 = vst [vmem:[#allocation2 + $0x1e0] sm:$0xff] %v1094
        %1191 = vst [vmem:[#allocation2 + $0x1e8] sm:$0xff] %v1095
        %1192 = vst [vmem:[#allocation2 + $0x1f0] sm:$0xff] %v1096
        %1193 = vst [vmem:[#allocation2 + $0x1f8] sm:$0xff] %v1097
        %1194 = vst [vmem:[#allocation2 + $0x200] sm:$0xff] %v1098
        %1195 = vst [vmem:[#allocation2 + $0x208] sm:$0xff] %v1099
        %1196 = vst [vmem:[#allocation2 + $0x210] sm:$0xff] %v1100
        %1197 = vst [vmem:[#allocation2 + $0x218] sm:$0xff] %v1101
        %1198 = vst [vmem:[#allocation2 + $0x220] sm:$0xff] %v1102
        %1199 = vst [vmem:[#allocation2 + $0x228] sm:$0xff] %v1103
        %1200 = vst [vmem:[#allocation2 + $0x230] sm:$0xff] %v1104
        %1201 = vst [vmem:[#allocation2 + $0x238] sm:$0xff] %v1105
        %1202 = vst [vmem:[#allocation2 + $0x240] sm:$0xff] %v1106
        %1203 = vst [vmem:[#allocation2 + $0x248] sm:$0xff] %v1107
        %1204 = vst [vmem:[#allocation2 + $0x250] sm:$0xff] %v1108
        %1205 = vst [vmem:[#allocation2 + $0x258] sm:$0xff] %v1109
        %1206 = vst [vmem:[#allocation2 + $0x260] sm:$0xff] %v1110
        %1207 = vst [vmem:[#allocation2 + $0x268] sm:$0xff] %v1111
        %1208 = vst [vmem:[#allocation2 + $0x270] sm:$0xff] %v1112
        %1209 = vst [vmem:[#allocation2 + $0x278] sm:$0xff] %v1113
        %1210 = vst [vmem:[#allocation2 + $0x280] sm:$0xff] %v1114
        %1211 = vst [vmem:[#allocation2 + $0x288] sm:$0xff] %v1115
        %1212 = vst [vmem:[#allocation2 + $0x290] sm:$0xff] %v1116
        %1213 = vst [vmem:[#allocation2 + $0x298] sm:$0xff] %v1117
        %1214 = vst [vmem:[#allocation2 + $0x2a0] sm:$0xff] %v1118
        %1215 = vst [vmem:[#allocation2 + $0x2a8] sm:$0xff] %v1119
        %1216 = vst [vmem:[#allocation2 + $0x2b0] sm:$0xff] %v1120
        %1217 = vst [vmem:[#allocation2 + $0x2b8] sm:$0xff] %v1121
        %1218 = vst [vmem:[#allocation2 + $0x2c0] sm:$0xff] %v1122
        %1219 = vst [vmem:[#allocation2 + $0x2c8] sm:$0xff] %v1123
        %1220 = vst [vmem:[#allocation2 + $0x2d0] sm:$0xff] %v1124
        %1221 = vst [vmem:[#allocation2 + $0x2d8] sm:$0xff] %v1125
        %1222 = vst [vmem:[#allocation2 + $0x2e0] sm:$0xff] %v1126
        %1223 = vst [vmem:[#allocation2 + $0x2e8] sm:$0xff] %v1127
        %1224 = vst [vmem:[#allocation2 + $0x2f0] sm:$0xff] %v1128
        %1225 = vst [vmem:[#allocation2 + $0x2f8] sm:$0xff] %v1129
        %s1226 = smul.u32 %s26, 128
        loop: start=0, step=1, limit=4
        $region45: #{tpu_custom_call.1} parent=31 // loop_pre_header
          _
        $region46: #{tpu_custom_call.1} parent=31 // loop_header
          %s1228 = sphi 0, %s1232
          %p1229 = scmp.ge.s32.totalorder %s1228, 4
        $region47: #{tpu_custom_call.1} parent=31 // loop_header_branch
          %1231 = sbr.rel (%p1229) target = $region51
        $region48: #{tpu_custom_call.1} parent=31 // loop_body
          %s1233 = smul.u32 %s1228, 64
          %s1234 = sadd.s32 %s1233, 256
          %s1235 = sadd.s32 %s1233, 512
          %s1236 = sshra.s32 %s1226, 7
          %s1237 = sand.u32 %s1226, 127
          %s1238 = sshra.s32 %s1233, 4
          %s1239 = sand.u32 %s1233, 15
          %s1240 = smul.u32 %s1238, 2
          %s1241 = sadd.s32 %s1236, %s1240
          %s1242 = smul.addr %s1241, 8
          %s1243 = scalar_lea.vmem [#allocation2], %s1242
          %v1244 = vld [vmem:[%s1243] sm:$0xff]
          %v1245 = vld [vmem:[%s1243 + $0x10] sm:$0xff]
          %v1246 = vld [vmem:[%s1243 + $0x20] sm:$0xff]
          %v1247 = vld [vmem:[%s1243 + $0x30] sm:$0xff]
          %s1248 = sshra.s32 %s1234, 4
          %s1249 = sand.u32 %s1234, 15
          %s1250 = smul.u32 %s1248, 2
          %s1251 = smul.addr %s1250, 8
          %s1252 = scalar_lea.vmem [#allocation2], %s1251
          %v1253 = vld [vmem:[%s1252] sm:$0xff]
          %v1254 = vld [vmem:[%s1252 + $0x8] sm:$0xff]
          %v1255 = vld [vmem:[%s1252 + $0x10] sm:$0xff]
          %v1256 = vld [vmem:[%s1252 + $0x18] sm:$0xff]
          %v1257 = vld [vmem:[%s1252 + $0x20] sm:$0xff]
          %v1258 = vld [vmem:[%s1252 + $0x28] sm:$0xff]
          %v1259 = vld [vmem:[%s1252 + $0x30] sm:$0xff]
          %v1260 = vld [vmem:[%s1252 + $0x38] sm:$0xff]
          %s1261 = sshra.s32 %s1235, 4
          %s1262 = sand.u32 %s1235, 15
          %s1263 = smul.u32 %s1261, 2
          %s1264 = smul.addr %s1263, 8
          %s1265 = scalar_lea.vmem [#allocation2], %s1264
          %v1266 = vld [vmem:[%s1265] sm:$0xff]
          %v1267 = vld [vmem:[%s1265 + $0x8] sm:$0xff]
          %v1268 = vld [vmem:[%s1265 + $0x10] sm:$0xff]
          %v1269 = vld [vmem:[%s1265 + $0x18] sm:$0xff]
          %v1270 = vld [vmem:[%s1265 + $0x20] sm:$0xff]
          %v1271 = vld [vmem:[%s1265 + $0x28] sm:$0xff]
          %v1272 = vld [vmem:[%s1265 + $0x30] sm:$0xff]
          %v1273 = vld [vmem:[%s1265 + $0x38] sm:$0xff]
          %1274 = vxpose.xlu0.c.b16.start [1/8] %v1253, 128
          %1275 = vxpose.xlu0.c.b16.cont [2/8] %v1255, 128
          %1276 = vxpose.xlu0.c.b16.cont [3/8] %v1257, 128
          %1277 = vxpose.xlu0.c.b16.cont [4/8] %v1259, 128
          %1278 = vxpose.xlu0.c.b16.cont [5/8] 0, 128
          %1279 = vxpose.xlu0.c.b16.cont [6/8] 0, 128
          %1280 = vxpose.xlu0.c.b16.cont [7/8] 0, 128
          %1281 = vxpose.xlu0.c.b16.end [8/8] 0, 128
          %v1282 = vpop.trf.xlu0
          %v1283 = vpop.trf.xlu0
          %v1284 = vpop.trf.xlu0
          %v1285 = vpop.trf.xlu0
          %v1286 = vpop.trf.xlu0
          %v1287 = vpop.trf.xlu0
          %v1288 = vpop.trf.xlu0
          %v1289 = vpop.trf.xlu0
          %1290 = vxpose.xlu0.c.b16.start [1/8] %v1254, 128
          %1291 = vxpose.xlu0.c.b16.cont [2/8] %v1256, 128
          %1292 = vxpose.xlu0.c.b16.cont [3/8] %v1258, 128
          %1293 = vxpose.xlu0.c.b16.cont [4/8] %v1260, 128
          %1294 = vxpose.xlu0.c.b16.cont [5/8] 0, 128
          %1295 = vxpose.xlu0.c.b16.cont [6/8] 0, 128
          %1296 = vxpose.xlu0.c.b16.cont [7/8] 0, 128
          %1297 = vxpose.xlu0.c.b16.end [8/8] 0, 128
          %v1298 = vpop.trf.xlu0
          %v1299 = vpop.trf.xlu0
          %v1300 = vpop.trf.xlu0
          %v1301 = vpop.trf.xlu0
          %v1302 = vpop.trf.xlu0
          %v1303 = vpop.trf.xlu0
          %v1304 = vpop.trf.xlu0
          %v1305 = vpop.trf.xlu0
          %vm1306 = vcmask 523264
          %v1308 = vsel %vm1306, %v1282, 0
          %v1311 = vsel %vm1306, %v1283, 0
          %v1314 = vsel %vm1306, %v1284, 0
          %v1317 = vsel %vm1306, %v1285, 0
          %v1320 = vsel %vm1306, %v1286, 0
          %v1323 = vsel %vm1306, %v1287, 0
          %v1326 = vsel %vm1306, %v1288, 0
          %v1329 = vsel %vm1306, %v1289, 0
          %v1332 = vsel %vm1306, %v1298, 0
          %v1335 = vsel %vm1306, %v1299, 0
          %v1338 = vsel %vm1306, %v1300, 0
          %v1341 = vsel %vm1306, %v1301, 0
          %v1344 = vsel %vm1306, %v1302, 0
          %v1347 = vsel %vm1306, %v1303, 0
          %v1350 = vsel %vm1306, %v1304, 0
          %v1353 = vsel %vm1306, %v1305, 0
          %1355 = vmatprep.subr.bf16.mxu0 0
          %1356 = vmatpush1.bf16.msra.mxu0 %v1244
          %1357 = vmatprep.subr.bf16.mxu0 0
          %1358 = vmatpush1.bf16.msra.mxu0 %v1245
          %1359 = vmatprep.subr.bf16.mxu0 0
          %1360 = vmatpush1.bf16.msra.mxu0 %v1246
          %1361 = vmatprep.subr.bf16.mxu0 0
          %1362 = vmatpush1.bf16.msra.mxu0 %v1247
          %1363 = vmatprep.subr.bf16.mxu0 0
          %1364 = vmatpush1.bf16.msra.mxu0 0
          %1365 = vmatprep.subr.bf16.mxu0 0
          %1366 = vmatpush1.bf16.msra.mxu0 0
          %1367 = vmatprep.subr.bf16.mxu0 0
          %1368 = vmatpush1.bf16.msra.mxu0 0
          %1369 = vmatprep.subr.bf16.mxu0 0
          %1370 = vmatpush1.bf16.msra.mxu0 0
          %1371 = vmatprep.subr.bf16.mxu0 0
          %1372 = vmatpush1.bf16.msra.mxu0 0
          %1373 = vmatprep.subr.bf16.mxu0 0
          %1374 = vmatpush1.bf16.msra.mxu0 0
          %1375 = vmatprep.subr.bf16.mxu0 0
          %1376 = vmatpush1.bf16.msra.mxu0 0
          %1377 = vmatprep.subr.bf16.mxu0 0
          %1378 = vmatpush1.bf16.msra.mxu0 0
          %1379 = vmatprep.subr.bf16.mxu0 0
          %1380 = vmatpush1.bf16.msra.mxu0 0
          %1381 = vmatprep.subr.bf16.mxu0 0
          %1382 = vmatpush1.bf16.msra.mxu0 0
          %1383 = vmatprep.subr.bf16.mxu0 0
          %1384 = vmatpush1.bf16.msra.mxu0 0
          %1385 = vmatprep.subr.bf16.mxu0 0
          %1386 = vmatpush1.bf16.msra.mxu0 0
          %1387 = vmatprep.mubr.bf16.mxu0 0
          %1388 = vmatmul.mubr.bf16.gmra.mrb[0].mxu0 %v1308
          %v1389 = vpop.f32.mrb[0].mxu0
          %v1390 = vadd.f32 0.0, %v1389
          %v1391 = vpop.f32.mrb[0].mxu0
          %v1392 = vpop.f32.mrb[0].mxu0
          %v1393 = vadd.f32 0.0, %v1392
          %v1394 = vpop.f32.mrb[0].mxu0
          %1395 = vmatprep.mubr.bf16.mxu0 0
          %1396 = vmatmul.mubr.bf16.gmra.mrb[0].mxu0 %v1311
          %v1397 = vpop.f32.mrb[0].mxu0
          %v1398 = vadd.f32 0.0, %v1397
          %v1399 = vpop.f32.mrb[0].mxu0
          %v1400 = vpop.f32.mrb[0].mxu0
          %v1401 = vadd.f32 0.0, %v1400
          %v1402 = vpop.f32.mrb[0].mxu0
          %1403 = vmatprep.mubr.bf16.mxu0 0
          %1404 = vmatmul.mubr.bf16.gmra.mrb[0].mxu0 %v1314
          %v1405 = vpop.f32.mrb[0].mxu0
          %v1406 = vadd.f32 0.0, %v1405
          %v1407 = vpop.f32.mrb[0].mxu0
          %v1408 = vpop.f32.mrb[0].mxu0
          %v1409 = vadd.f32 0.0, %v1408
          %v1410 = vpop.f32.mrb[0].mxu0
          %1411 = vmatprep.mubr.bf16.mxu0 0
          %1412 = vmatmul.mubr.bf16.gmra.mrb[0].mxu0 %v1317
          %v1413 = vpop.f32.mrb[0].mxu0
          %v1414 = vadd.f32 0.0, %v1413
          %v1415 = vpop.f32.mrb[0].mxu0
          %v1416 = vpop.f32.mrb[0].mxu0
          %v1417 = vadd.f32 0.0, %v1416
          %v1418 = vpop.f32.mrb[0].mxu0
          %1419 = vmatprep.mubr.bf16.mxu0 0
          %1420 = vmatmul.mubr.bf16.gmra.mrb[0].mxu0 %v1320
          %v1421 = vpop.f32.mrb[0].mxu0
          %v1422 = vadd.f32 0.0, %v1421
          %v1423 = vpop.f32.mrb[0].mxu0
          %v1424 = vpop.f32.mrb[0].mxu0
          %v1425 = vadd.f32 0.0, %v1424
          %v1426 = vpop.f32.mrb[0].mxu0
          %1427 = vmatprep.mubr.bf16.mxu0 0
          %1428 = vmatmul.mubr.bf16.gmra.mrb[0].mxu0 %v1323
          %v1429 = vpop.f32.mrb[0].mxu0
          %v1430 = vadd.f32 0.0, %v1429
          %v1431 = vpop.f32.mrb[0].mxu0
          %v1432 = vpop.f32.mrb[0].mxu0
          %v1433 = vadd.f32 0.0, %v1432
          %v1434 = vpop.f32.mrb[0].mxu0
          %1435 = vmatprep.mubr.bf16.mxu0 0
          %1436 = vmatmul.mubr.bf16.gmra.mrb[0].mxu0 %v1326
          %v1437 = vpop.f32.mrb[0].mxu0
          %v1438 = vadd.f32 0.0, %v1437
          %v1439 = vpop.f32.mrb[0].mxu0
          %v1440 = vpop.f32.mrb[0].mxu0
          %v1441 = vadd.f32 0.0, %v1440
          %v1442 = vpop.f32.mrb[0].mxu0
          %1443 = vmatprep.mubr.bf16.mxu0 0
          %1444 = vmatmul.mubr.bf16.gmra.mrb[0].mxu0 %v1329
          %v1445 = vpop.f32.mrb[0].mxu0
          %v1446 = vadd.f32 0.0, %v1445
          %v1447 = vpop.f32.mrb[0].mxu0
          %v1448 = vpop.f32.mrb[0].mxu0
          %v1449 = vadd.f32 0.0, %v1448
          %v1450 = vpop.f32.mrb[0].mxu0
          %1451 = vmatprep.mubr.bf16.mxu0 0
          %1452 = vmatmul.mubr.bf16.gmra.mrb[0].mxu0 %v1332
          %v1453 = vpop.f32.mrb[0].mxu0
          %v1454 = vadd.f32 0.0, %v1453
          %v1455 = vpop.f32.mrb[0].mxu0
          %v1456 = vpop.f32.mrb[0].mxu0
          %v1457 = vadd.f32 0.0, %v1456
          %v1458 = vpop.f32.mrb[0].mxu0
          %1459 = vmatprep.mubr.bf16.mxu0 0
          %1460 = vmatmul.mubr.bf16.gmra.mrb[0].mxu0 %v1335
          %v1461 = vpop.f32.mrb[0].mxu0
          %v1462 = vadd.f32 0.0, %v1461
          %v1463 = vpop.f32.mrb[0].mxu0
          %v1464 = vpop.f32.mrb[0].mxu0
          %v1465 = vadd.f32 0.0, %v1464
          %v1466 = vpop.f32.mrb[0].mxu0
          %1467 = vmatprep.mubr.bf16.mxu0 0
          %1468 = vmatmul.mubr.bf16.gmra.mrb[0].mxu0 %v1338
          %v1469 = vpop.f32.mrb[0].mxu0
          %v1470 = vadd.f32 0.0, %v1469
          %v1471 = vpop.f32.mrb[0].mxu0
          %v1472 = vpop.f32.mrb[0].mxu0
          %v1473 = vadd.f32 0.0, %v1472
          %v1474 = vpop.f32.mrb[0].mxu0
          %1475 = vmatprep.mubr.bf16.mxu0 0
          %1476 = vmatmul.mubr.bf16.gmra.mrb[0].mxu0 %v1341
          %v1477 = vpop.f32.mrb[0].mxu0
          %v1478 = vadd.f32 0.0, %v1477
          %v1479 = vpop.f32.mrb[0].mxu0
          %v1480 = vpop.f32.mrb[0].mxu0
          %v1481 = vadd.f32 0.0, %v1480
          %v1482 = vpop.f32.mrb[0].mxu0
          %1483 = vmatprep.mubr.bf16.mxu0 0
          %1484 = vmatmul.mubr.bf16.gmra.mrb[0].mxu0 %v1344
          %v1485 = vpop.f32.mrb[0].mxu0
          %v1486 = vadd.f32 0.0, %v1485
          %v1487 = vpop.f32.mrb[0].mxu0
          %v1488 = vpop.f32.mrb[0].mxu0
          %v1489 = vadd.f32 0.0, %v1488
          %v1490 = vpop.f32.mrb[0].mxu0
          %1491 = vmatprep.mubr.bf16.mxu0 0
          %1492 = vmatmul.mubr.bf16.gmra.mrb[0].mxu0 %v1347
          %v1493 = vpop.f32.mrb[0].mxu0
          %v1494 = vadd.f32 0.0, %v1493
          %v1495 = vpop.f32.mrb[0].mxu0
          %v1496 = vpop.f32.mrb[0].mxu0
          %v1497 = vadd.f32 0.0, %v1496
          %v1498 = vpop.f32.mrb[0].mxu0
          %1499 = vmatprep.mubr.bf16.mxu0 0
          %1500 = vmatmul.mubr.bf16.gmra.mrb[0].mxu0 %v1350
          %v1501 = vpop.f32.mrb[0].mxu0
          %v1502 = vadd.f32 0.0, %v1501
          %v1503 = vpop.f32.mrb[0].mxu0
          %v1504 = vpop.f32.mrb[0].mxu0
          %v1505 = vadd.f32 0.0, %v1504
          %v1506 = vpop.f32.mrb[0].mxu0
          %1507 = vmatprep.mubr.bf16.mxu0 0
          %1508 = vmatmul.mubr.bf16.gmra.mrb[0].mxu0 %v1353
          %v1509 = vpop.f32.mrb[0].mxu0
          %v1510 = vadd.f32 0.0, %v1509
          %v1511 = vpop.f32.mrb[0].mxu0
          %v1512 = vpop.f32.mrb[0].mxu0
          %v1513 = vadd.f32 0.0, %v1512
          %v1514 = vpop.f32.mrb[0].mxu0
          %1515 = vdwg.mxu0
          %v1516 = vmax.f32 %v1390, %v1406
          %v1517 = vmax.f32 %v1393, %v1409
          %v1518 = vmax.f32 %v1398, %v1414
          %v1519 = vmax.f32 %v1401, %v1417
          %v1520 = vmax.f32 %v1516, %v1422
          %v1521 = vmax.f32 %v1517, %v1425
          %v1522 = vmax.f32 %v1518, %v1430
          %v1523 = vmax.f32 %v1519, %v1433
          %v1524 = vmax.f32 %v1520, %v1438
          %v1525 = vmax.f32 %v1521, %v1441
          %v1526 = vmax.f32 %v1522, %v1446
          %v1527 = vmax.f32 %v1523, %v1449
          %v1528 = vmax.f32 %v1524, %v1454
          %v1529 = vmax.f32 %v1525, %v1457
          %v1530 = vmax.f32 %v1526, %v1462
          %v1531 = vmax.f32 %v1527, %v1465
          %v1532 = vmax.f32 %v1528, %v1470
          %v1533 = vmax.f32 %v1529, %v1473
          %v1534 = vmax.f32 %v1530, %v1478
          %v1535 = vmax.f32 %v1531, %v1481
          %v1536 = vmax.f32 %v1532, %v1486
          %v1537 = vmax.f32 %v1533, %v1489
          %v1538 = vmax.f32 %v1534, %v1494
          %v1539 = vmax.f32 %v1535, %v1497
          %v1540 = vmax.f32 %v1536, %v1502
          %v1541 = vmax.f32 %v1537, %v1505
          %v1542 = vmax.f32 %v1538, %v1510
          %v1543 = vmax.f32 %v1539, %v1513
          %v1544 = vmax.f32 %v1540, %v1541
          %v1545 = vmax.f32 %v1542, %v1543
          %v1546 = vmax.f32 %v1544, %v1545
          %v1547 = vrot.slane %v1546, 4
          %v1548 = vmax.f32 %v1546, %v1547
          %v1549 = vrot.slane %v1548, 2
          %v1550 = vmax.f32 %v1548, %v1549
          %v1551 = vrot.slane %v1550, 1
          %v1552 = vmax.f32 %v1550, %v1551
          %v1553 = vsub.f32 %v1390, %v1552
          %v1554 = vsub.f32 %v1393, %v1552
          %v1555 = vsub.f32 %v1398, %v1552
          %v1556 = vsub.f32 %v1401, %v1552
          %v1557 = vsub.f32 %v1406, %v1552
          %v1558 = vsub.f32 %v1409, %v1552
          %v1559 = vsub.f32 %v1414, %v1552
          %v1560 = vsub.f32 %v1417, %v1552
          %v1561 = vsub.f32 %v1422, %v1552
          %v1562 = vsub.f32 %v1425, %v1552
          %v1563 = vsub.f32 %v1430, %v1552
          %v1564 = vsub.f32 %v1433, %v1552
          %v1565 = vsub.f32 %v1438, %v1552
          %v1566 = vsub.f32 %v1441, %v1552
          %v1567 = vsub.f32 %v1446, %v1552
          %v1568 = vsub.f32 %v1449, %v1552
          %v1569 = vsub.f32 %v1454, %v1552
          %v1570 = vsub.f32 %v1457, %v1552
          %v1571 = vsub.f32 %v1462, %v1552
          %v1572 = vsub.f32 %v1465, %v1552
          %v1573 = vsub.f32 %v1470, %v1552
          %v1574 = vsub.f32 %v1473, %v1552
          %v1575 = vsub.f32 %v1478, %v1552
          %v1576 = vsub.f32 %v1481, %v1552
          %v1577 = vsub.f32 %v1486, %v1552
          %v1578 = vsub.f32 %v1489, %v1552
          %v1579 = vsub.f32 %v1494, %v1552
          %v1580 = vsub.f32 %v1497, %v1552
          %v1581 = vsub.f32 %v1502, %v1552
          %v1582 = vsub.f32 %v1505, %v1552
          %v1583 = vsub.f32 %v1510, %v1552
          %v1584 = vsub.f32 %v1513, %v1552
          %v1585 = vmul.f32 %v1553, 1.442695
          %v1586 = vpow.pop %v1585
          %v1587 = vmul.f32 %v1554, 1.442695
          %v1588 = vpow.pop %v1587
          %v1589 = vmul.f32 %v1555, 1.442695
          %v1590 = vpow.pop %v1589
          %v1591 = vmul.f32 %v1556, 1.442695
          %v1592 = vpow.pop %v1591
          %v1593 = vmul.f32 %v1557, 1.442695
          %v1594 = vpow.pop %v1593
          %v1595 = vmul.f32 %v1558, 1.442695
          %v1596 = vpow.pop %v1595
          %v1597 = vmul.f32 %v1559, 1.442695
          %v1598 = vpow.pop %v1597
          %v1599 = vmul.f32 %v1560, 1.442695
          %v1600 = vpow.pop %v1599
          %v1601 = vmul.f32 %v1561, 1.442695
          %v1602 = vpow.pop %v1601
          %v1603 = vmul.f32 %v1562, 1.442695
          %v1604 = vpow.pop %v1603
          %v1605 = vmul.f32 %v1563, 1.442695
          %v1606 = vpow.pop %v1605
          %v1607 = vmul.f32 %v1564, 1.442695
          %v1608 = vpow.pop %v1607
          %v1609 = vmul.f32 %v1565, 1.442695
          %v1610 = vpow.pop %v1609
          %v1611 = vmul.f32 %v1566, 1.442695
          %v1612 = vpow.pop %v1611
          %v1613 = vmul.f32 %v1567, 1.442695
          %v1614 = vpow.pop %v1613
          %v1615 = vmul.f32 %v1568, 1.442695
          %v1616 = vpow.pop %v1615
          %v1617 = vmul.f32 %v1569, 1.442695
          %v1618 = vpow.pop %v1617
          %v1619 = vmul.f32 %v1570, 1.442695
          %v1620 = vpow.pop %v1619
          %v1621 = vmul.f32 %v1571, 1.442695
          %v1622 = vpow.pop %v1621
          %v1623 = vmul.f32 %v1572, 1.442695
          %v1624 = vpow.pop %v1623
          %v1625 = vmul.f32 %v1573, 1.442695
          %v1626 = vpow.pop %v1625
          %v1627 = vmul.f32 %v1574, 1.442695
          %v1628 = vpow.pop %v1627
          %v1629 = vmul.f32 %v1575, 1.442695
          %v1630 = vpow.pop %v1629
          %v1631 = vmul.f32 %v1576, 1.442695
          %v1632 = vpow.pop %v1631
          %v1633 = vmul.f32 %v1577, 1.442695
          %v1634 = vpow.pop %v1633
          %v1635 = vmul.f32 %v1578, 1.442695
          %v1636 = vpow.pop %v1635
          %v1637 = vmul.f32 %v1579, 1.442695
          %v1638 = vpow.pop %v1637
          %v1639 = vmul.f32 %v1580, 1.442695
          %v1640 = vpow.pop %v1639
          %v1641 = vmul.f32 %v1581, 1.442695
          %v1642 = vpow.pop %v1641
          %v1643 = vmul.f32 %v1582, 1.442695
          %v1644 = vpow.pop %v1643
          %v1645 = vmul.f32 %v1583, 1.442695
          %v1646 = vpow.pop %v1645
          %v1647 = vmul.f32 %v1584, 1.442695
          %v1648 = vpow.pop %v1647
          %v1649 = vpack.c.bf16 %v1588, %v1586
          %v1650 = vpack.c.bf16 %v1592, %v1590
          %v1651 = vpack.c.bf16 %v1596, %v1594
          %v1652 = vpack.c.bf16 %v1600, %v1598
          %v1653 = vpack.c.bf16 %v1604, %v1602
          %v1654 = vpack.c.bf16 %v1608, %v1606
          %v1655 = vpack.c.bf16 %v1612, %v1610
          %v1656 = vpack.c.bf16 %v1616, %v1614
          %v1657 = vpack.c.bf16 %v1620, %v1618
          %v1658 = vpack.c.bf16 %v1624, %v1622
          %v1659 = vpack.c.bf16 %v1628, %v1626
          %v1660 = vpack.c.bf16 %v1632, %v1630
          %v1661 = vpack.c.bf16 %v1636, %v1634
          %v1662 = vpack.c.bf16 %v1640, %v1638
          %v1663 = vpack.c.bf16 %v1644, %v1642
          %v1664 = vpack.c.bf16 %v1648, %v1646
          %1665 = vmatprep.subr.bf16.mxu0 0
          %1666 = vmatpush1.bf16.msra.mxu0 %v1649
          %1667 = vmatprep.subr.bf16.mxu0 0
          %1668 = vmatpush1.bf16.msra.mxu0 %v1650
          %1669 = vmatprep.subr.bf16.mxu0 0
          %1670 = vmatpush1.bf16.msra.mxu0 %v1651
          %1671 = vmatprep.subr.bf16.mxu0 0
          %1672 = vmatpush1.bf16.msra.mxu0 %v1652
          %1673 = vmatprep.subr.bf16.mxu0 0
          %1674 = vmatpush1.bf16.msra.mxu0 %v1653
          %1675 = vmatprep.subr.bf16.mxu0 0
          %1676 = vmatpush1.bf16.msra.mxu0 %v1654
          %1677 = vmatprep.subr.bf16.mxu0 0
          %1678 = vmatpush1.bf16.msra.mxu0 %v1655
          %1679 = vmatprep.subr.bf16.mxu0 0
          %1680 = vmatpush1.bf16.msra.mxu0 %v1656
          %1681 = vmatprep.subr.bf16.mxu0 0
          %1682 = vmatpush1.bf16.msra.mxu0 %v1657
          %1683 = vmatprep.subr.bf16.mxu0 0
          %1684 = vmatpush1.bf16.msra.mxu0 %v1658
          %1685 = vmatprep.subr.bf16.mxu0 0
          %1686 = vmatpush1.bf16.msra.mxu0 %v1659
          %1687 = vmatprep.subr.bf16.mxu0 0
          %1688 = vmatpush1.bf16.msra.mxu0 %v1660
          %1689 = vmatprep.subr.bf16.mxu0 0
          %1690 = vmatpush1.bf16.msra.mxu0 %v1661
          %1691 = vmatprep.subr.bf16.mxu0 0
          %1692 = vmatpush1.bf16.msra.mxu0 %v1662
          %1693 = vmatprep.subr.bf16.mxu0 0
          %1694 = vmatpush1.bf16.msra.mxu0 %v1663
          %1695 = vmatprep.subr.bf16.mxu0 0
          %1696 = vmatpush1.bf16.msra.mxu0 %v1664
          %1697 = vmatprep.mubr.bf16.mxu0 1065369472
          %1698 = vmatmul.mubr.bf16.gmra.mrb[0].mxu0 1065369472
          %v1699 = vpop.f32.mrb[0].mxu0
          %v1700 = vadd.f32 0.0, %v1699
          %v1701 = vpop.f32.mrb[0].mxu0
          %v1702 = vpop.f32.mrb[0].mxu0
          %v1703 = vpop.f32.mrb[0].mxu0
          %1704 = vdwg.mxu0
          %1705 = vmatprep.subr.bf16.mxu0 0
          %1706 = vmatpush1.bf16.msra.mxu0 %v1649
          %1707 = vmatprep.subr.bf16.mxu0 0
          %1708 = vmatpush1.bf16.msra.mxu0 %v1650
          %1709 = vmatprep.subr.bf16.mxu0 0
          %1710 = vmatpush1.bf16.msra.mxu0 %v1651
          %1711 = vmatprep.subr.bf16.mxu0 0
          %1712 = vmatpush1.bf16.msra.mxu0 %v1652
          %1713 = vmatprep.subr.bf16.mxu0 0
          %1714 = vmatpush1.bf16.msra.mxu0 %v1653
          %1715 = vmatprep.subr.bf16.mxu0 0
          %1716 = vmatpush1.bf16.msra.mxu0 %v1654
          %1717 = vmatprep.subr.bf16.mxu0 0
          %1718 = vmatpush1.bf16.msra.mxu0 %v1655
          %1719 = vmatprep.subr.bf16.mxu0 0
          %1720 = vmatpush1.bf16.msra.mxu0 %v1656
          %1721 = vmatprep.subr.bf16.mxu0 0
          %1722 = vmatpush1.bf16.msra.mxu0 %v1657
          %1723 = vmatprep.subr.bf16.mxu0 0
          %1724 = vmatpush1.bf16.msra.mxu0 %v1658
          %1725 = vmatprep.subr.bf16.mxu0 0
          %1726 = vmatpush1.bf16.msra.mxu0 %v1659
          %1727 = vmatprep.subr.bf16.mxu0 0
          %1728 = vmatpush1.bf16.msra.mxu0 %v1660
          %1729 = vmatprep.subr.bf16.mxu0 0
          %1730 = vmatpush1.bf16.msra.mxu0 %v1661
          %1731 = vmatprep.subr.bf16.mxu0 0
          %1732 = vmatpush1.bf16.msra.mxu0 %v1662
          %1733 = vmatprep.subr.bf16.mxu0 0
          %1734 = vmatpush1.bf16.msra.mxu0 %v1663
          %1735 = vmatprep.subr.bf16.mxu0 0
          %1736 = vmatpush1.bf16.msra.mxu0 %v1664
          %1737 = vmatprep.mubr.bf16.mxu0 %v1267
          %1738 = vmatmul.mubr.bf16.gmra.mrb[0].mxu0 %v1266
          %v1739 = vpop.f32.mrb[0].mxu0
          %v1740 = vadd.f32 0.0, %v1739
          %v1741 = vpop.f32.mrb[0].mxu0
          %v1742 = vpop.f32.mrb[0].mxu0
          %v1743 = vadd.f32 0.0, %v1742
          %v1744 = vpop.f32.mrb[0].mxu0
          %1745 = vmatprep.mubr.bf16.mxu0 %v1269
          %1746 = vmatmul.mubr.bf16.gmra.mrb[0].mxu0 %v1268
          %v1747 = vpop.f32.mrb[0].mxu0
          %v1748 = vadd.f32 0.0, %v1747
          %v1749 = vpop.f32.mrb[0].mxu0
          %v1750 = vpop.f32.mrb[0].mxu0
          %v1751 = vadd.f32 0.0, %v1750
          %v1752 = vpop.f32.mrb[0].mxu0
          %1753 = vmatprep.mubr.bf16.mxu0 %v1271
          %1754 = vmatmul.mubr.bf16.gmra.mrb[0].mxu0 %v1270
          %v1755 = vpop.f32.mrb[0].mxu0
          %v1756 = vadd.f32 0.0, %v1755
          %v1757 = vpop.f32.mrb[0].mxu0
          %v1758 = vpop.f32.mrb[0].mxu0
          %v1759 = vadd.f32 0.0, %v1758
          %v1760 = vpop.f32.mrb[0].mxu0
          %1761 = vmatprep.mubr.bf16.mxu0 %v1273
          %1762 = vmatmul.mubr.bf16.gmra.mrb[0].mxu0 %v1272
          %v1763 = vpop.f32.mrb[0].mxu0
          %v1764 = vadd.f32 0.0, %v1763
          %v1765 = vpop.f32.mrb[0].mxu0
          %v1766 = vpop.f32.mrb[0].mxu0
          %v1767 = vadd.f32 0.0, %v1766
          %v1768 = vpop.f32.mrb[0].mxu0
          %1769 = vdwg.mxu0
          %v1770 = vrcp.pop %v1700
          %v1771 = vlaneseq
          %v1772 = vshrl.u32 %v1771, 7
          %v1773 = vsub.s32 0, %v1772
          %v1774 = vrot.slane %v1770, %v1773
          %v1775 = vmul.f32 %v1740, %v1774
          %v1776 = vmul.f32 %v1743, %v1774
          %v1777 = vmul.f32 %v1748, %v1774
          %v1778 = vmul.f32 %v1751, %v1774
          %v1779 = vmul.f32 %v1756, %v1774
          %v1780 = vmul.f32 %v1759, %v1774
          %v1781 = vmul.f32 %v1764, %v1774
          %v1782 = vmul.f32 %v1767, %v1774
          %v1783 = vpack.c.bf16 %v1776, %v1775
          %v1784 = vpack.c.bf16 %v1778, %v1777
          %v1785 = vpack.c.bf16 %v1780, %v1779
          %v1786 = vpack.c.bf16 %v1782, %v1781
          %s1787 = smul.addr %s1238, 8
          %s1788 = scalar_lea.vmem [#allocation3], %s1787
          %1789 = vst [vmem:[%s1788] sm:$0xff] %v1783
          %1790 = vst [vmem:[%s1788 + $0x8] sm:$0xff] %v1784
          %1791 = vst [vmem:[%s1788 + $0x10] sm:$0xff] %v1785
          %1792 = vst [vmem:[%s1788 + $0x18] sm:$0xff] %v1786
        $region49: #{tpu_custom_call.1} parent=31 // loop_footer
          %s1232 = sadd.s32 1, %s1228
        $region50: #{tpu_custom_call.1} parent=31 // loop_footer_branch
          %1227 = sbr.rel target = $region46
        $region51: #{tpu_custom_call.1} parent=31 // loop_exit
          _
        %v1793 = vld [vmem:[#allocation9] sm:$0xff]
        %v1794 = vld [vmem:[#allocation3] sm:$0xff]
        %v1795 = vld [vmem:[#allocation3 + $0x8] sm:$0xff]
        %v1796 = vld [vmem:[#allocation3 + $0x10] sm:$0xff]
        %v1797 = vld [vmem:[#allocation3 + $0x18] sm:$0xff]
        %v1798 = vld [vmem:[#allocation3 + $0x20] sm:$0xff]
        %v1799 = vld [vmem:[#allocation3 + $0x28] sm:$0xff]
        %v1800 = vld [vmem:[#allocation3 + $0x30] sm:$0xff]
        %v1801 = vld [vmem:[#allocation3 + $0x38] sm:$0xff]
        %v1802 = vld [vmem:[#allocation3 + $0x40] sm:$0xff]
        %v1803 = vld [vmem:[#allocation3 + $0x48] sm:$0xff]
        %v1804 = vld [vmem:[#allocation3 + $0x50] sm:$0xff]
        %v1805 = vld [vmem:[#allocation3 + $0x58] sm:$0xff]
        %v1806 = vld [vmem:[#allocation3 + $0x60] sm:$0xff]
        %v1807 = vld [vmem:[#allocation3 + $0x68] sm:$0xff]
        %v1808 = vld [vmem:[#allocation3 + $0x70] sm:$0xff]
        %v1809 = vld [vmem:[#allocation3 + $0x78] sm:$0xff]
        %v1811 = vunpack.c.l.b16 %v1793
        %v1812 = vunpack.c.h.b16 %v1793
        %v1813 = vpack.c.b16 %v1811, %v1811
        %v1814 = vpack.c.b16 %v1812, %v1812
        %1817 = vmatprep.subr.bf16.mxu0 0
        %1818 = vmatpush1.bf16.msra.mxu0 %v1794
        %1819 = vmatprep.subr.bf16.mxu0 0
        %1820 = vmatpush1.bf16.msra.mxu0 %v1795
        %1821 = vmatprep.subr.bf16.mxu0 0
        %1822 = vmatpush1.bf16.msra.mxu0 %v1796
        %1823 = vmatprep.subr.bf16.mxu0 0
        %1824 = vmatpush1.bf16.msra.mxu0 %v1797
        %1825 = vmatprep.subr.bf16.mxu0 0
        %1826 = vmatpush1.bf16.msra.mxu0 %v1798
        %1827 = vmatprep.subr.bf16.mxu0 0
        %1828 = vmatpush1.bf16.msra.mxu0 %v1799
        %1829 = vmatprep.subr.bf16.mxu0 0
        %1830 = vmatpush1.bf16.msra.mxu0 %v1800
        %1831 = vmatprep.subr.bf16.mxu0 0
        %1832 = vmatpush1.bf16.msra.mxu0 %v1801
        %1833 = vmatprep.subr.bf16.mxu0 0
        %1834 = vmatpush1.bf16.msra.mxu0 %v1802
        %1835 = vmatprep.subr.bf16.mxu0 0
        %1836 = vmatpush1.bf16.msra.mxu0 %v1803
        %1837 = vmatprep.subr.bf16.mxu0 0
        %1838 = vmatpush1.bf16.msra.mxu0 %v1804
        %1839 = vmatprep.subr.bf16.mxu0 0
        %1840 = vmatpush1.bf16.msra.mxu0 %v1805
        %1841 = vmatprep.subr.bf16.mxu0 0
        %1842 = vmatpush1.bf16.msra.mxu0 %v1806
        %1843 = vmatprep.subr.bf16.mxu0 0
        %1844 = vmatpush1.bf16.msra.mxu0 %v1807
        %1845 = vmatprep.subr.bf16.mxu0 0
        %1846 = vmatpush1.bf16.msra.mxu0 %v1808
        %1847 = vmatprep.subr.bf16.mxu0 0
        %1848 = vmatpush1.bf16.msra.mxu0 %v1809
        %1849 = vmatprep.mubr.bf16.mxu0 %v1814
        %1850 = vmatmul.mubr.bf16.gmra.mrb[0].mxu0 %v1813
        %v1851 = vpop.f32.mrb[0].mxu0
        %v1852 = vadd.f32 0.0, %v1851
        %v1853 = vpop.f32.mrb[0].mxu0
        %v1854 = vpop.f32.mrb[0].mxu0
        %v1855 = vpop.f32.mrb[0].mxu0
        %1856 = vdwg.mxu0
        %1857 = vst [vmem:[%s225] sm:$0xff] %v1852
        %s1858 = sand.u32 %s111, 1
        %s1859 = scalar_lea.sflag [#allocation6], %s1858
        %s1860 = sand.u32 %s111, 1
        %s1861 = smul.addr %s1860, 8
        %s1862 = scalar_lea.vmem [#allocation10], %s1861
        // Predicated region
        $region52: #{tpu_custom_call.1} parent=31 // pred_check
          %p1863 = pneg %p121
        $region53: #{tpu_custom_call.1} parent=31 // pred_check_branch
          %1865 = sbr.rel (%p1863) target = $region55
        $region54: #{tpu_custom_call.1} parent=31 // pred_region
          %s1867 = ssub.s32 128, 128
          %1868 = vsyncadd %s1859, %s1867
          %s1869 = smul.addr %s25, 2
          %s1870 = sadd.s32 %s26, %s1869
          %s1871 = smul.addr %s1870, 128
          %s1872 = scalar_lea.hbm %s3, %s1871
          %s1874 = sshll.u32 %s1862, 4
          %s1875 = int_to_ptr.vmem [resolvable:$true] %s1874
          %1877 = dma.vmem_to_hbm [thread:$0]  %s1875, 128, %s1872, %s1859
        $region55: #{tpu_custom_call.1} parent=31 // pred_fallthru
          _
      $region32: #{tpu_custom_call.1} parent=5 // pred_fallthru
        _
      %p1878 = scmp.le.s32.totalorder 2, %s16
      // Predicated region
      $region56: #{tpu_custom_call.1} parent=5 // pred_check
        %p1879 = pneg %p1878
      $region57: #{tpu_custom_call.1} parent=5 // pred_check_branch
        %1881 = sbr.rel (%p1879) target = $region59
      $region58: #{tpu_custom_call.1} parent=5 // pred_region
        %s1882 = ssub.s32 %s16, 2
        // Predicated region
        $region60: #{tpu_custom_call.1} parent=58 // pred_check
          %p1883 = pneg %p127
        $region61: #{tpu_custom_call.1} parent=58 // pred_check_branch
          %1885 = sbr.rel (%p1883) target = $region63
        $region62: #{tpu_custom_call.1} parent=58 // pred_region
          %s1886 = sand.u32 %s112, 1
          %s1887 = scalar_lea.sflag [#allocation6], %s1886
          %s1888 = sand.u32 %s112, 1
          %s1889 = smul.addr %s1888, 8
          %s1890 = scalar_lea.vmem [#allocation10], %s1889
          %1891 = dma.done %s1887, 128
        $region63: #{tpu_custom_call.1} parent=58 // pred_fallthru
          _
      $region59: #{tpu_custom_call.1} parent=5 // pred_fallthru
        _
    $region6: #{tpu_custom_call.1} parent=1 // loop_footer
      %s20 = sadd.s32 1, %s16
    $region7: #{tpu_custom_call.1} parent=1 // loop_footer_branch
      %15 = sbr.rel target = $region3
    $region8: #{tpu_custom_call.1} parent=1 // loop_exit
      _
    %1892 = vsyncpa [#allocation5], 1
    %s1893 = scalar_lea.sflag [#allocation5], 1
    %1894 = vsyncpa %s1893, 1
    %1895 = vsyncpa [#allocation8], 1
    %1896 = vsyncpa [#allocation6], 1
    %s1897 = scalar_lea.sflag [#allocation6], 1
    %1898 = vsyncpa %s1897, 1

</llo_original>
